<compile_context>
chip_gen: v5e
topology: v5e:2x2
jax: 0.10.0
libtpu: 0.0.40
codegen_flags: <defaults>
</compile_context>

<pallas_src>
import functools

import jax
import jax.numpy as jnp
from jax.experimental import pallas as pl
from jax.experimental.pallas import tpu as pltpu

IN_FEATS = 28 * 28          # 784 — used unpadded (block == full array dim is legal)
OUT_PAD = 128               # lane-dense padded logits width (unmasked vst)
N_CLASSES = 10


def _ceil_to(x, m):
    return -(-x // m) * m


def mlp_kernel(x_ref, w1_ref, b1_ref, w2_ref, b2_ref, w3_ref, b3_ref,
               w4_ref, b4_ref, o_ref):
    # bf16 cast done in-kernel: x arrives as raw f32, no extra wrapper HBM pass.
    x = x_ref[...].astype(jnp.bfloat16)
    # fc1 + relu   (dropout1: identity at inference)
    h = jnp.dot(x, w1_ref[...], preferred_element_type=jnp.float32)
    h = jnp.maximum(h + b1_ref[...], 0.0).astype(jnp.bfloat16)
    # fc2 + relu   (dropout2: identity at inference)
    h = jnp.dot(h, w2_ref[...], preferred_element_type=jnp.float32)
    h = jnp.maximum(h + b2_ref[...], 0.0).astype(jnp.bfloat16)
    # fc3 + relu   (dropout3: identity at inference)
    h = jnp.dot(h, w3_ref[...], preferred_element_type=jnp.float32)
    h = jnp.maximum(h + b3_ref[...], 0.0).astype(jnp.bfloat16)
    # fc4 (no activation), output padded to 128 lanes, bf16 writeback.
    out = jnp.dot(h, w4_ref[...], preferred_element_type=jnp.float32)
    o_ref[...] = (out + b4_ref[...]).astype(o_ref.dtype)


def prepare_params(params):
    """One-time conversion of torch-layout f32 params to kernel layout.

    torch weights are (out, in); kernel wants (in, out) bf16. Only the last
    layer is padded (10 -> 128 output lanes) so the store is lane-dense.
    Biases stay f32 as (1, out) rows (added after f32 accumulation).
    """
    (w1, b1), (w2, b2), (w3, b3), (w4, b4) = params

    w4t = jnp.zeros((128, OUT_PAD), jnp.float32).at[:, :N_CLASSES].set(w4.T)
    b4p = jnp.zeros((1, OUT_PAD), jnp.float32).at[:, :N_CLASSES].set(b4[None, :])

    return (
        w1.T.astype(jnp.bfloat16), b1[None, :].astype(jnp.float32),
        w2.T.astype(jnp.bfloat16), b2[None, :].astype(jnp.float32),
        w3.T.astype(jnp.bfloat16), b3[None, :].astype(jnp.float32),
        w4t.astype(jnp.bfloat16), b4p,
    )


@functools.partial(jax.jit, static_argnames=("block_b",))
def digit_classifier_forward(x_nchw, prepared, block_b=1024):
    """x_nchw: (B, 1, 28, 28) float32. prepared: output of prepare_params.
    Returns logits (B, 10) float32."""
    B = x_nchw.shape[0]
    x = x_nchw.reshape(B, -1)  # nn.Flatten -> (B, 784), same element order as torch

    # ---- batch tiling (all static under jit) ----
    b16 = max(16, _ceil_to(B, 16))          # bf16 sublane packing: multiples of 16
    n_tiles = -(-b16 // block_b)            # tiles needed at requested block size
    if b16 >= 32:
        n_tiles = max(n_tiles, 2)           # >=2 grid steps -> v7x megacore split
    tb = _ceil_to(-(-b16 // n_tiles), 16)   # per-tile rows, minimal padding waste
    b_pad = tb * n_tiles
    if b_pad != B:
        x = jnp.pad(x, ((0, b_pad - B), (0, 0)))

    (w1, b1, w2, b2, w3, b3, w4, b4) = prepared

    # Weights / biases: constant block index => stay VMEM-resident across the
    # whole batch grid (no re-DMA). x / out blocks are double-buffered.
    in_specs = [
        pl.BlockSpec((tb, IN_FEATS), lambda i: (i, 0)),    # x (f32, full 784 dim)
        pl.BlockSpec((IN_FEATS, 512), lambda i: (0, 0)),   # w1
        pl.BlockSpec((1, 512), lambda i: (0, 0)),          # b1
        pl.BlockSpec((512, 256), lambda i: (0, 0)),        # w2
        pl.BlockSpec((1, 256), lambda i: (0, 0)),          # b2
        pl.BlockSpec((256, 128), lambda i: (0, 0)),        # w3
        pl.BlockSpec((1, 128), lambda i: (0, 0)),          # b3
        pl.BlockSpec((128, OUT_PAD), lambda i: (0, 0)),    # w4 (padded to 128 lanes)
        pl.BlockSpec((1, OUT_PAD), lambda i: (0, 0)),      # b4 (padded)
    ]
    out_specs = pl.BlockSpec((tb, OUT_PAD), lambda i: (i, 0))

    out = pl.pallas_call(
        mlp_kernel,
        out_shape=jax.ShapeDtypeStruct((b_pad, OUT_PAD), jnp.bfloat16),
        grid=(n_tiles,),
        in_specs=in_specs,
        out_specs=out_specs,
        compiler_params=pltpu.CompilerParams(
            dimension_semantics=("parallel",),
            vmem_limit_bytes=32 * 1024 * 1024),
    )(x, w1, b1, w2, b2, w3, b3, w4, b4)

    return out[:B, :N_CLASSES].astype(jnp.float32)


def init_params(key):
    """Deterministic init matching the torch module's layer shapes (torch-style
    (out, in) weights, nn.Linear-like uniform bounds)."""
    dims = [(512, IN_FEATS), (256, 512), (128, 256), (N_CLASSES, 128)]
    params = []
    for fan_out, fan_in in dims:
        kw, kb, key = jax.random.split(key, 3)
        bound = 1.0 / jnp.sqrt(fan_in)
        w = jax.random.uniform(kw, (fan_out, fan_in), jnp.float32, -bound, bound)
        b = jax.random.uniform(kb, (fan_out,), jnp.float32, -bound, bound)
        params.append((w, b))
    return params


if __name__ == "__main__":
    key = jax.random.PRNGKey(0)
    kx, kp = jax.random.split(key)

    B = 32  # small batch; >= 32 exercises the two-grid-step (megacore) path
    x = jax.random.normal(kx, (B, 1, 28, 28), dtype=jnp.float32)  # NCHW like torch
    params = init_params(kp)
    prepared = prepare_params(params)  # one-time weight layout/bf16 conversion

    logits = digit_classifier_forward(x, prepared)
    jax.block_until_ready(logits)
    assert logits.shape == (B, N_CLASSES)

    # Reference in plain JAX mirroring the kernel's numerics exactly:
    # bf16 inputs/weights, f32 accumulation, bf16 final store, dropout = identity.
    (w1, b1, w2, b2, w3, b3, w4, b4) = prepared
    h = x.reshape(B, -1).astype(jnp.bfloat16)
    for i, (w, b) in enumerate(((w1, b1), (w2, b2), (w3, b3), (w4, b4))):
        h = jnp.dot(h, w, preferred_element_type=jnp.float32) + b
        if i < 3:
            h = jnp.maximum(h, 0.0).astype(jnp.bfloat16)
        else:
            h = h.astype(jnp.bfloat16)
    ref = h[:, :N_CLASSES].astype(jnp.float32)
    assert jnp.allclose(logits, ref, atol=1e-2, rtol=1e-2)

    # Sanity against the full-f32 torch-equivalent reference
    # (loose tolerance for the intentional bf16 weight/activation tradeoff).
    hf = x.reshape(B, -1)
    for i, (w, b) in enumerate(params):
        hf = hf @ w.T + b
        if i < 3:
            hf = jnp.maximum(hf, 0.0)
    assert jnp.allclose(logits, hf, atol=5e-2, rtol=5e-2)

    print("KERNEL_OK")
</pallas_src>

<mosaic_0001>
module attributes {stable_mosaic.version = 11 : i64} {
  func.func @mlp_kernel(%arg0: i32, %arg1: memref<16x784xf32, #tpu.memory_space<vmem>>, %arg2: memref<784x512xbf16, #tpu.memory_space<vmem>>, %arg3: memref<1x512xf32, #tpu.memory_space<vmem>>, %arg4: memref<512x256xbf16, #tpu.memory_space<vmem>>, %arg5: memref<1x256xf32, #tpu.memory_space<vmem>>, %arg6: memref<256x128xbf16, #tpu.memory_space<vmem>>, %arg7: memref<1x128xf32, #tpu.memory_space<vmem>>, %arg8: memref<128x128xbf16, #tpu.memory_space<vmem>>, %arg9: memref<1x128xf32, #tpu.memory_space<vmem>>, %arg10: memref<16x128xbf16, #tpu.memory_space<vmem>>) attributes {dimension_semantics = [#tpu.dimension_semantics<parallel>], iteration_bounds = array<i64: 2>, scalar_prefetch = 0 : i64, scratch_operands = 0 : i64, tpu.core_type = #tpu.core_type<tc>, window_params = [{transform_indices = @transform_0, window_bounds = array<i64: 16, 784>}, {pipeline_mode = #tpu.pipeline_mode<synchronous>, transform_indices = @transform_1, window_bounds = array<i64: 784, 512>}, {pipeline_mode = #tpu.pipeline_mode<synchronous>, transform_indices = @transform_2, window_bounds = array<i64: 1, 512>}, {pipeline_mode = #tpu.pipeline_mode<synchronous>, transform_indices = @transform_3, window_bounds = array<i64: 512, 256>}, {pipeline_mode = #tpu.pipeline_mode<synchronous>, transform_indices = @transform_4, window_bounds = array<i64: 1, 256>}, {pipeline_mode = #tpu.pipeline_mode<synchronous>, transform_indices = @transform_5, window_bounds = array<i64: 256, 128>}, {pipeline_mode = #tpu.pipeline_mode<synchronous>, transform_indices = @transform_6, window_bounds = array<i64: 1, 128>}, {pipeline_mode = #tpu.pipeline_mode<synchronous>, transform_indices = @transform_7, window_bounds = array<i64: 128, 128>}, {pipeline_mode = #tpu.pipeline_mode<synchronous>, transform_indices = @transform_8, window_bounds = array<i64: 1, 128>}, {transform_indices = @transform_9, window_bounds = array<i64: 16, 128>}]} {
    %c0 = arith.constant 0 : index
    %c0_0 = arith.constant 0 : index
    %0 = vector.load %arg1[%c0, %c0_0] : memref<16x784xf32, #tpu.memory_space<vmem>>, vector<16x784xf32>
    %1 = arith.truncf %0 : vector<16x784xf32> to vector<16x784xbf16>
    %c0_1 = arith.constant 0 : index
    %c0_2 = arith.constant 0 : index
    %2 = vector.load %arg2[%c0_1, %c0_2] : memref<784x512xbf16, #tpu.memory_space<vmem>>, vector<784x512xbf16>
    %cst = arith.constant dense<0.000000e+00> : vector<16x512xf32>
    %3 = tpu.matmul %1, %2, %cst {dimension_numbers = #tpu.dot_dimension_numbers<[1], [0], [0], [1], [0, 0, 1, 1], [], []>} : vector<16x784xbf16>, vector<784x512xbf16>, vector<16x512xf32> -> vector<16x512xf32>
    %c0_3 = arith.constant 0 : index
    %c0_4 = arith.constant 0 : index
    %4 = vector.load %arg3[%c0_3, %c0_4] : memref<1x512xf32, #tpu.memory_space<vmem>>, vector<1x512xf32>
    %5 = vector.broadcast %4 : vector<1x512xf32> to vector<16x512xf32>
    %6 = arith.addf %3, %5 : vector<16x512xf32>
    %cst_5 = arith.constant 0.000000e+00 : f32
    %7 = vector.broadcast %cst_5 : f32 to vector<16x512xf32>
    %8 = arith.maximumf %6, %7 : vector<16x512xf32>
    %9 = arith.truncf %8 : vector<16x512xf32> to vector<16x512xbf16>
    %c0_6 = arith.constant 0 : index
    %c0_7 = arith.constant 0 : index
    %10 = vector.load %arg4[%c0_6, %c0_7] : memref<512x256xbf16, #tpu.memory_space<vmem>>, vector<512x256xbf16>
    %cst_8 = arith.constant dense<0.000000e+00> : vector<16x256xf32>
    %11 = tpu.matmul %9, %10, %cst_8 {dimension_numbers = #tpu.dot_dimension_numbers<[1], [0], [0], [1], [0, 0, 1, 1], [], []>} : vector<16x512xbf16>, vector<512x256xbf16>, vector<16x256xf32> -> vector<16x256xf32>
    %c0_9 = arith.constant 0 : index
    %c0_10 = arith.constant 0 : index
    %12 = vector.load %arg5[%c0_9, %c0_10] : memref<1x256xf32, #tpu.memory_space<vmem>>, vector<1x256xf32>
    %13 = vector.broadcast %12 : vector<1x256xf32> to vector<16x256xf32>
    %14 = arith.addf %11, %13 : vector<16x256xf32>
    %cst_11 = arith.constant 0.000000e+00 : f32
    %15 = vector.broadcast %cst_11 : f32 to vector<16x256xf32>
    %16 = arith.maximumf %14, %15 : vector<16x256xf32>
    %17 = arith.truncf %16 : vector<16x256xf32> to vector<16x256xbf16>
    %c0_12 = arith.constant 0 : index
    %c0_13 = arith.constant 0 : index
    %18 = vector.load %arg6[%c0_12, %c0_13] : memref<256x128xbf16, #tpu.memory_space<vmem>>, vector<256x128xbf16>
    %cst_14 = arith.constant dense<0.000000e+00> : vector<16x128xf32>
    %19 = tpu.matmul %17, %18, %cst_14 {dimension_numbers = #tpu.dot_dimension_numbers<[1], [0], [0], [1], [0, 0, 1, 1], [], []>} : vector<16x256xbf16>, vector<256x128xbf16>, vector<16x128xf32> -> vector<16x128xf32>
    %c0_15 = arith.constant 0 : index
    %c0_16 = arith.constant 0 : index
    %20 = vector.load %arg7[%c0_15, %c0_16] : memref<1x128xf32, #tpu.memory_space<vmem>>, vector<1x128xf32>
    %21 = vector.broadcast %20 : vector<1x128xf32> to vector<16x128xf32>
    %22 = arith.addf %19, %21 : vector<16x128xf32>
    %cst_17 = arith.constant 0.000000e+00 : f32
    %23 = vector.broadcast %cst_17 : f32 to vector<16x128xf32>
    %24 = arith.maximumf %22, %23 : vector<16x128xf32>
    %25 = arith.truncf %24 : vector<16x128xf32> to vector<16x128xbf16>
    %c0_18 = arith.constant 0 : index
    %c0_19 = arith.constant 0 : index
    %26 = vector.load %arg8[%c0_18, %c0_19] : memref<128x128xbf16, #tpu.memory_space<vmem>>, vector<128x128xbf16>
    %cst_20 = arith.constant dense<0.000000e+00> : vector<16x128xf32>
    %27 = tpu.matmul %25, %26, %cst_20 {dimension_numbers = #tpu.dot_dimension_numbers<[1], [0], [0], [1], [0, 0, 1, 1], [], []>} : vector<16x128xbf16>, vector<128x128xbf16>, vector<16x128xf32> -> vector<16x128xf32>
    %c0_21 = arith.constant 0 : index
    %c0_22 = arith.constant 0 : index
    %28 = vector.load %arg9[%c0_21, %c0_22] : memref<1x128xf32, #tpu.memory_space<vmem>>, vector<1x128xf32>
    %29 = vector.broadcast %28 : vector<1x128xf32> to vector<16x128xf32>
    %30 = arith.addf %27, %29 : vector<16x128xf32>
    %31 = arith.truncf %30 : vector<16x128xf32> to vector<16x128xbf16>
    %c0_23 = arith.constant 0 : index
    %c0_24 = arith.constant 0 : index
    %32 = vector.load %arg10[%c0_23, %c0_24] : memref<16x128xbf16, #tpu.memory_space<vmem>>, vector<16x128xbf16>
    tpu.vector_store %arg10[%c0_23, %c0_24], %31 {strides = array<i32>} : memref<16x128xbf16, #tpu.memory_space<vmem>>, vector<16x128xbf16>,
    return
  }
  func.func @transform_0(%arg0: i32) -> (i32, i32) {
    %c0_i32 = arith.constant 0 : i32
    %c0_i32_0 = arith.constant 0 : i32
    return %arg0, %c0_i32 : i32, i32
  }
  func.func @transform_1(%arg0: i32) -> (i32, i32) {
    %c0_i32 = arith.constant 0 : i32
    %c0_i32_0 = arith.constant 0 : i32
    %c0_i32_1 = arith.constant 0 : i32
    return %c0_i32, %c0_i32_0 : i32, i32
  }
  func.func @transform_2(%arg0: i32) -> (i32, i32) {
    %c0_i32 = arith.constant 0 : i32
    %c0_i32_0 = arith.constant 0 : i32
    %c0_i32_1 = arith.constant 0 : i32
    return %c0_i32, %c0_i32_0 : i32, i32
  }
  func.func @transform_3(%arg0: i32) -> (i32, i32) {
    %c0_i32 = arith.constant 0 : i32
    %c0_i32_0 = arith.constant 0 : i32
    %c0_i32_1 = arith.constant 0 : i32
    return %c0_i32, %c0_i32_0 : i32, i32
  }
  func.func @transform_4(%arg0: i32) -> (i32, i32) {
    %c0_i32 = arith.constant 0 : i32
    %c0_i32_0 = arith.constant 0 : i32
    %c0_i32_1 = arith.constant 0 : i32
    return %c0_i32, %c0_i32_0 : i32, i32
  }
  func.func @transform_5(%arg0: i32) -> (i32, i32) {
    %c0_i32 = arith.constant 0 : i32
    %c0_i32_0 = arith.constant 0 : i32
    %c0_i32_1 = arith.constant 0 : i32
    return %c0_i32, %c0_i32_0 : i32, i32
  }
  func.func @transform_6(%arg0: i32) -> (i32, i32) {
    %c0_i32 = arith.constant 0 : i32
    %c0_i32_0 = arith.constant 0 : i32
    %c0_i32_1 = arith.constant 0 : i32
    return %c0_i32, %c0_i32_0 : i32, i32
  }
  func.func @transform_7(%arg0: i32) -> (i32, i32) {
    %c0_i32 = arith.constant 0 : i32
    %c0_i32_0 = arith.constant 0 : i32
    %c0_i32_1 = arith.constant 0 : i32
    return %c0_i32, %c0_i32_0 : i32, i32
  }
  func.func @transform_8(%arg0: i32) -> (i32, i32) {
    %c0_i32 = arith.constant 0 : i32
    %c0_i32_0 = arith.constant 0 : i32
    %c0_i32_1 = arith.constant 0 : i32
    return %c0_i32, %c0_i32_0 : i32, i32
  }
  func.func @transform_9(%arg0: i32) -> (i32, i32) {
    %c0_i32 = arith.constant 0 : i32
    %c0_i32_0 = arith.constant 0 : i32
    return %arg0, %c0_i32 : i32, i32
  }
}

</mosaic_0001>

<llo_original>
// kernel: digit_classifier_forward.1
$region0: #{digit_classifier_forward.1}
  #allocation0 [shape = 'u32[]', space=smem, size = 0x4, offset = 0x4, fixed_abs, tag = 'smem constant byte address 0x4 - core index']
  #allocation1 [shape = 'u32[72,128]{1,0:T(1,128)}', space=vmem, size = 0x9000, scoped, tag = 'internal scratch']
  %s0 = inlined_call_operand.vmem [shape: f32[32,784], index: 0, kind: input, shape index: {}]
  %s1 = inlined_call_operand.hbm [shape: bf16[784,512], index: 1, kind: input, shape index: {}]
  %s2 = inlined_call_operand.vmem [shape: f32[1,512], index: 2, kind: input, shape index: {}]
  %s3 = inlined_call_operand.vmem [shape: bf16[512,256], index: 3, kind: input, shape index: {}]
  %s4 = inlined_call_operand.vmem [shape: f32[1,256], index: 4, kind: input, shape index: {}]
  %s5 = inlined_call_operand.vmem [shape: bf16[256,128], index: 5, kind: input, shape index: {}]
  %s6 = inlined_call_operand.vmem [shape: f32[1,128], index: 6, kind: input, shape index: {}]
  %s7 = inlined_call_operand.vmem [shape: bf16[128,128], index: 7, kind: input, shape index: {}]
  %s8 = inlined_call_operand.vmem [shape: f32[1,128], index: 8, kind: input, shape index: {}]
  %s9 = inlined_call_operand.vmem [shape: bf16[32,128], index: 9, kind: output, shape index: {}]
  %s10 = sld [smem:[#allocation0]]
  $region73: #{digit_classifier_forward.1} parent=0
    _
  %s12 = ssub.s32 1, %s10
  %s13 = scalar_select 0, %s12, %s10
  $region1: #{digit_classifier_forward.1} parent=0
    #allocation2 [shape = 'u8[802816]{0}', space=vmem, size = 0xc4000, scoped, tag = 'input window, operand 1, single buffered']
    #allocation3 [shape = 's32[2]{0}', space=sflag, size = 0x8, scoped, tag = 'scoped memory for digit_classifier_forward.1']
    %14 = vsyncpa [#allocation3], 0
    loop: start=0, step=1, limit=4
    $region2: #{digit_classifier_forward.1} parent=1 // loop_pre_header
      _
    $region3: #{digit_classifier_forward.1} parent=1 // loop_header
      %s16 = sphi 0, %s20
      %p17 = scmp.ge.s32.totalorder %s16, 4
      %s26 = sphi 0, %s28
      %s29 = sphi 0, %s26
      %s30 = sphi 0, %s29
      %s46 = sphi 0, %s30
      %s50 = sphi 0, %s50
      %s52 = sphi 0, %s50
      %s53 = sphi 0, %s52
      %s67 = sphi 0, %s53
      %s71 = sphi 0, %s71
      %s73 = sphi 0, %s71
      %s74 = sphi 0, %s73
      %s88 = sphi 0, %s74
      %s92 = sphi 0, %s92
      %s94 = sphi 0, %s92
      %s95 = sphi 0, %s94
      %s109 = sphi 0, %s95
      %s113 = sphi 0, %s113
      %s115 = sphi 0, %s113
      %s116 = sphi 0, %s115
      %s130 = sphi 0, %s116
      %s134 = sphi 0, %s134
      %s136 = sphi 0, %s134
      %s137 = sphi 0, %s136
      %s151 = sphi 0, %s137
      %s155 = sphi 0, %s155
      %s157 = sphi 0, %s155
      %s158 = sphi 0, %s157
      %s172 = sphi 0, %s158
      %s176 = sphi 0, %s176
      %s178 = sphi 0, %s176
      %s179 = sphi 0, %s178
      %s193 = sphi 0, %s179
      %s197 = sphi 0, %s197
      %s199 = sphi 0, %s197
      %s200 = sphi 0, %s199
      %s214 = sphi 0, %s200
      %s220 = sphi 0, %s222
      %s223 = sphi 0, %s220
      %s224 = sphi 0, %s223
      %s240 = sphi 0, %s224
    $region4: #{digit_classifier_forward.1} parent=1 // loop_header_branch
      %19 = sbr.rel (%p17) target = $region8
    $region5: #{digit_classifier_forward.1} parent=1 // loop_body
      %s21 = ssub.s32 %s16, 1
      %s22 = ssub.s32 %s16, 2
      %s23 = sadd.s32 %s16, 1
      %s24 = ssub.s32 %s16, %s23
      %p25 = scmp.eq.s32.totalorder %s24, 0
      %s27 = sadd.s32 %s26, 1
      %s28 = scalar_select %p25, %s26, %s27
      %p31 = pneg %p25
      %p32 = scmp.eq.s32.totalorder %s16, 1
      %p33 = por %p31, %p32
      %p34 = scmp.ne.s32.totalorder %s26, %s29
      %p35 = scmp.eq.s32.totalorder %s16, 0
      %p36 = por %p34, %p35
      %p37 = scmp.ne.s32.totalorder %s26, %s29
      %p38 = scmp.eq.s32.totalorder %s21, 1
      %p39 = por %p37, %p38
      %p40 = scmp.ne.s32.totalorder %s29, %s30
      %p41 = scmp.eq.s32.totalorder %s21, 0
      %p42 = por %p40, %p41
      %p43 = scmp.ne.s32.totalorder %s29, %s30
      %p44 = scmp.eq.s32.totalorder %s22, 1
      %p45 = por %p43, %p44
      %p47 = scmp.ne.s32.totalorder %s30, %s46
      %p48 = scmp.eq.s32.totalorder %s22, 0
      %p49 = por %p47, %p48
      %s51 = sadd.s32 %s50, 1
      %p54 = scmp.eq.s32.totalorder %s16, 1
      %p55 = scmp.ne.s32.totalorder %s50, %s52
      %p56 = scmp.eq.s32.totalorder %s16, 0
      %p57 = por %p55, %p56
      %p58 = scmp.ne.s32.totalorder %s50, %s52
      %p59 = scmp.eq.s32.totalorder %s21, 1
      %p60 = por %p58, %p59
      %p61 = scmp.ne.s32.totalorder %s52, %s53
      %p62 = scmp.eq.s32.totalorder %s21, 0
      %p63 = por %p61, %p62
      %p64 = scmp.ne.s32.totalorder %s52, %s53
      %p65 = scmp.eq.s32.totalorder %s22, 1
      %p66 = por %p64, %p65
      %p68 = scmp.ne.s32.totalorder %s53, %s67
      %p69 = scmp.eq.s32.totalorder %s22, 0
      %p70 = por %p68, %p69
      %s72 = sadd.s32 %s71, 1
      %p75 = scmp.eq.s32.totalorder %s16, 1
      %p76 = scmp.ne.s32.totalorder %s71, %s73
      %p77 = scmp.eq.s32.totalorder %s16, 0
      %p78 = por %p76, %p77
      %p79 = scmp.ne.s32.totalorder %s71, %s73
      %p80 = scmp.eq.s32.totalorder %s21, 1
      %p81 = por %p79, %p80
      %p82 = scmp.ne.s32.totalorder %s73, %s74
      %p83 = scmp.eq.s32.totalorder %s21, 0
      %p84 = por %p82, %p83
      %p85 = scmp.ne.s32.totalorder %s73, %s74
      %p86 = scmp.eq.s32.totalorder %s22, 1
      %p87 = por %p85, %p86
      %p89 = scmp.ne.s32.totalorder %s74, %s88
      %p90 = scmp.eq.s32.totalorder %s22, 0
      %p91 = por %p89, %p90
      %s93 = sadd.s32 %s92, 1
      %p96 = scmp.eq.s32.totalorder %s16, 1
      %p97 = scmp.ne.s32.totalorder %s92, %s94
      %p98 = scmp.eq.s32.totalorder %s16, 0
      %p99 = por %p97, %p98
      %p100 = scmp.ne.s32.totalorder %s92, %s94
      %p101 = scmp.eq.s32.totalorder %s21, 1
      %p102 = por %p100, %p101
      %p103 = scmp.ne.s32.totalorder %s94, %s95
      %p104 = scmp.eq.s32.totalorder %s21, 0
      %p105 = por %p103, %p104
      %p106 = scmp.ne.s32.totalorder %s94, %s95
      %p107 = scmp.eq.s32.totalorder %s22, 1
      %p108 = por %p106, %p107
      %p110 = scmp.ne.s32.totalorder %s95, %s109
      %p111 = scmp.eq.s32.totalorder %s22, 0
      %p112 = por %p110, %p111
      %s114 = sadd.s32 %s113, 1
      %p117 = scmp.eq.s32.totalorder %s16, 1
      %p118 = scmp.ne.s32.totalorder %s113, %s115
      %p119 = scmp.eq.s32.totalorder %s16, 0
      %p120 = por %p118, %p119
      %p121 = scmp.ne.s32.totalorder %s113, %s115
      %p122 = scmp.eq.s32.totalorder %s21, 1
      %p123 = por %p121, %p122
      %p124 = scmp.ne.s32.totalorder %s115, %s116
      %p125 = scmp.eq.s32.totalorder %s21, 0
      %p126 = por %p124, %p125
      %p127 = scmp.ne.s32.totalorder %s115, %s116
      %p128 = scmp.eq.s32.totalorder %s22, 1
      %p129 = por %p127, %p128
      %p131 = scmp.ne.s32.totalorder %s116, %s130
      %p132 = scmp.eq.s32.totalorder %s22, 0
      %p133 = por %p131, %p132
      %s135 = sadd.s32 %s134, 1
      %p138 = scmp.eq.s32.totalorder %s16, 1
      %p139 = scmp.ne.s32.totalorder %s134, %s136
      %p140 = scmp.eq.s32.totalorder %s16, 0
      %p141 = por %p139, %p140
      %p142 = scmp.ne.s32.totalorder %s134, %s136
      %p143 = scmp.eq.s32.totalorder %s21, 1
      %p144 = por %p142, %p143
      %p145 = scmp.ne.s32.totalorder %s136, %s137
      %p146 = scmp.eq.s32.totalorder %s21, 0
      %p147 = por %p145, %p146
      %p148 = scmp.ne.s32.totalorder %s136, %s137
      %p149 = scmp.eq.s32.totalorder %s22, 1
      %p150 = por %p148, %p149
      %p152 = scmp.ne.s32.totalorder %s137, %s151
      %p153 = scmp.eq.s32.totalorder %s22, 0
      %p154 = por %p152, %p153
      %s156 = sadd.s32 %s155, 1
      %p159 = scmp.eq.s32.totalorder %s16, 1
      %p160 = scmp.ne.s32.totalorder %s155, %s157
      %p161 = scmp.eq.s32.totalorder %s16, 0
      %p162 = por %p160, %p161
      %p163 = scmp.ne.s32.totalorder %s155, %s157
      %p164 = scmp.eq.s32.totalorder %s21, 1
      %p165 = por %p163, %p164
      %p166 = scmp.ne.s32.totalorder %s157, %s158
      %p167 = scmp.eq.s32.totalorder %s21, 0
      %p168 = por %p166, %p167
      %p169 = scmp.ne.s32.totalorder %s157, %s158
      %p170 = scmp.eq.s32.totalorder %s22, 1
      %p171 = por %p169, %p170
      %p173 = scmp.ne.s32.totalorder %s158, %s172
      %p174 = scmp.eq.s32.totalorder %s22, 0
      %p175 = por %p173, %p174
      %s177 = sadd.s32 %s176, 1
      %p180 = scmp.eq.s32.totalorder %s16, 1
      %p181 = scmp.ne.s32.totalorder %s176, %s178
      %p182 = scmp.eq.s32.totalorder %s16, 0
      %p183 = por %p181, %p182
      %p184 = scmp.ne.s32.totalorder %s176, %s178
      %p185 = scmp.eq.s32.totalorder %s21, 1
      %p186 = por %p184, %p185
      %p187 = scmp.ne.s32.totalorder %s178, %s179
      %p188 = scmp.eq.s32.totalorder %s21, 0
      %p189 = por %p187, %p188
      %p190 = scmp.ne.s32.totalorder %s178, %s179
      %p191 = scmp.eq.s32.totalorder %s22, 1
      %p192 = por %p190, %p191
      %p194 = scmp.ne.s32.totalorder %s179, %s193
      %p195 = scmp.eq.s32.totalorder %s22, 0
      %p196 = por %p194, %p195
      %s198 = sadd.s32 %s197, 1
      %p201 = scmp.eq.s32.totalorder %s16, 1
      %p202 = scmp.ne.s32.totalorder %s197, %s199
      %p203 = scmp.eq.s32.totalorder %s16, 0
      %p204 = por %p202, %p203
      %p205 = scmp.ne.s32.totalorder %s197, %s199
      %p206 = scmp.eq.s32.totalorder %s21, 1
      %p207 = por %p205, %p206
      %p208 = scmp.ne.s32.totalorder %s199, %s200
      %p209 = scmp.eq.s32.totalorder %s21, 0
      %p210 = por %p208, %p209
      %p211 = scmp.ne.s32.totalorder %s199, %s200
      %p212 = scmp.eq.s32.totalorder %s22, 1
      %p213 = por %p211, %p212
      %p215 = scmp.ne.s32.totalorder %s200, %s214
      %p216 = scmp.eq.s32.totalorder %s22, 0
      %p217 = por %p215, %p216
      %s218 = ssub.s32 %s16, %s23
      %p219 = scmp.eq.s32.totalorder %s218, 0
      %s221 = sadd.s32 %s220, 1
      %s222 = scalar_select %p219, %s220, %s221
      %p225 = pneg %p219
      %p226 = scmp.eq.s32.totalorder %s16, 1
      %p227 = por %p225, %p226
      %p228 = scmp.ne.s32.totalorder %s220, %s223
      %p229 = scmp.eq.s32.totalorder %s16, 0
      %p230 = por %p228, %p229
      %p231 = scmp.ne.s32.totalorder %s220, %s223
      %p232 = scmp.eq.s32.totalorder %s21, 1
      %p233 = por %p231, %p232
      %p234 = scmp.ne.s32.totalorder %s223, %s224
      %p235 = scmp.eq.s32.totalorder %s21, 0
      %p236 = por %p234, %p235
      %p237 = scmp.ne.s32.totalorder %s223, %s224
      %p238 = scmp.eq.s32.totalorder %s22, 1
      %p239 = por %p237, %p238
      %p241 = scmp.ne.s32.totalorder %s224, %s240
      %p242 = scmp.eq.s32.totalorder %s22, 0
      %p243 = por %p241, %p242
      %p244 = scmp.le.s32.totalorder 1, %s16
      %p245 = scmp.lt.s32.totalorder %s16, 3
      %p246 = pnand %p244, %p245
      %p247 = pneg %p246
      // Predicated region
      $region9: #{digit_classifier_forward.1} parent=5 // pred_check
        _
      $region10: #{digit_classifier_forward.1} parent=5 // pred_check_branch
        %249 = sbr.rel (%p246) target = $region12
      $region11: #{digit_classifier_forward.1} parent=5 // pred_region
        %s250 = ssub.s32 %s16, 1
        // Predicated region
        $region13: #{digit_classifier_forward.1} parent=11 // pred_check
          %p251 = pneg %p63
        $region14: #{digit_classifier_forward.1} parent=11 // pred_check_branch
          %253 = sbr.rel (%p251) target = $region16
        $region15: #{digit_classifier_forward.1} parent=11 // pred_region
          %255 = vsyncadd [#allocation3], 0
          %s256 = sshll.u32 %s1, 4
          %s257 = int_to_ptr.hbm [resolvable:$true] %s256
          %s258 = sshll.u32 [#allocation2], 4
          %s259 = int_to_ptr.vmem [resolvable:$true] %s258
          %264 = dma.hbm_to_vmem [thread:$0]  %s257, 25088, %s259, [#allocation3], 256, 256, 16
        $region16: #{digit_classifier_forward.1} parent=11 // pred_fallthru
          _
        // Predicated region
        $region17: #{digit_classifier_forward.1} parent=11 // pred_check
          %p265 = pneg %p84
        $region18: #{digit_classifier_forward.1} parent=11 // pred_check_branch
          %267 = sbr.rel (%p265) target = $region20
        $region19: #{digit_classifier_forward.1} parent=11 // pred_region
          _
        $region20: #{digit_classifier_forward.1} parent=11 // pred_fallthru
          _
        // Predicated region
        $region21: #{digit_classifier_forward.1} parent=11 // pred_check
          %p268 = pneg %p105
        $region22: #{digit_classifier_forward.1} parent=11 // pred_check_branch
          %270 = sbr.rel (%p268) target = $region24
        $region23: #{digit_classifier_forward.1} parent=11 // pred_region
          _
        $region24: #{digit_classifier_forward.1} parent=11 // pred_fallthru
          _
        // Predicated region
        $region25: #{digit_classifier_forward.1} parent=11 // pred_check
          %p271 = pneg %p126
        $region26: #{digit_classifier_forward.1} parent=11 // pred_check_branch
          %273 = sbr.rel (%p271) target = $region28
        $region27: #{digit_classifier_forward.1} parent=11 // pred_region
          _
        $region28: #{digit_classifier_forward.1} parent=11 // pred_fallthru
          _
        // Predicated region
        $region29: #{digit_classifier_forward.1} parent=11 // pred_check
          %p274 = pneg %p147
        $region30: #{digit_classifier_forward.1} parent=11 // pred_check_branch
          %276 = sbr.rel (%p274) target = $region32
        $region31: #{digit_classifier_forward.1} parent=11 // pred_region
          _
        $region32: #{digit_classifier_forward.1} parent=11 // pred_fallthru
          _
        // Predicated region
        $region33: #{digit_classifier_forward.1} parent=11 // pred_check
          %p277 = pneg %p168
        $region34: #{digit_classifier_forward.1} parent=11 // pred_check_branch
          %279 = sbr.rel (%p277) target = $region36
        $region35: #{digit_classifier_forward.1} parent=11 // pred_region
          _
        $region36: #{digit_classifier_forward.1} parent=11 // pred_fallthru
          _
        // Predicated region
        $region37: #{digit_classifier_forward.1} parent=11 // pred_check
          %p280 = pneg %p189
        $region38: #{digit_classifier_forward.1} parent=11 // pred_check_branch
          %282 = sbr.rel (%p280) target = $region40
        $region39: #{digit_classifier_forward.1} parent=11 // pred_region
          _
        $region40: #{digit_classifier_forward.1} parent=11 // pred_fallthru
          _
        // Predicated region
        $region41: #{digit_classifier_forward.1} parent=11 // pred_check
          %p283 = pneg %p210
        $region42: #{digit_classifier_forward.1} parent=11 // pred_check_branch
          %285 = sbr.rel (%p283) target = $region44
        $region43: #{digit_classifier_forward.1} parent=11 // pred_region
          _
        $region44: #{digit_classifier_forward.1} parent=11 // pred_fallthru
          _
      $region12: #{digit_classifier_forward.1} parent=5 // pred_fallthru
        _
      %p286 = scmp.lt.s32.totalorder %s16, 2
      // Predicated region
      $region45: #{digit_classifier_forward.1} parent=5 // pred_check
        %p287 = pneg %p286
      $region46: #{digit_classifier_forward.1} parent=5 // pred_check_branch
        %289 = sbr.rel (%p287) target = $region48
      $region47: #{digit_classifier_forward.1} parent=5 // pred_region
        // Predicated region
        $region49: #{digit_classifier_forward.1} parent=47 // pred_check
          %p290 = pneg %p36
        $region50: #{digit_classifier_forward.1} parent=47 // pred_check_branch
          %292 = sbr.rel (%p290) target = $region52
        $region51: #{digit_classifier_forward.1} parent=47 // pred_region
          %s293 = smul.u32 2, %s16
          %p294 = scmp.lt.s32.totalorder %s293, 3
          %s295 = scalar_select %p294, %s293, 3
          %s296 = smul.addr %s295, 7
          %s297 = smul.addr %s296, 8
          %s298 = scalar_lea.vmem %s0, %s297
          %s299 = smul.u32 2, %s16
        $region52: #{digit_classifier_forward.1} parent=47 // pred_fallthru
          _
      $region48: #{digit_classifier_forward.1} parent=5 // pred_fallthru
        _
      %p300 = scmp.le.s32.totalorder 1, %s16
      %p301 = scmp.lt.s32.totalorder %s16, 3
      %p302 = pnand %p300, %p301
      %p303 = pneg %p302
      // Predicated region
      $region53: #{digit_classifier_forward.1} parent=5 // pred_check
        _
      $region54: #{digit_classifier_forward.1} parent=5 // pred_check_branch
        %305 = sbr.rel (%p302) target = $region56
      $region55: #{digit_classifier_forward.1} parent=5 // pred_region
        %s306 = ssub.s32 %s16, 1
        // Predicated region
        $region57: #{digit_classifier_forward.1} parent=55 // pred_check
          %p307 = pneg %p63
        $region58: #{digit_classifier_forward.1} parent=55 // pred_check_branch
          %309 = sbr.rel (%p307) target = $region60
        $region59: #{digit_classifier_forward.1} parent=55 // pred_region
          %311 = dma.done [#allocation3], 25088
        $region60: #{digit_classifier_forward.1} parent=55 // pred_fallthru
          _
        %s312 = smul.u32 2, %s21
        %p313 = scmp.lt.s32.totalorder %s312, 3
        %s314 = scalar_select %p313, %s312, 3
        %s315 = smul.addr %s314, 7
        %s316 = smul.addr %s315, 8
        %s317 = scalar_lea.vmem %s0, %s316
        %p318 = pneg %p42
        %p319 = pneg %p39
        %p320 = pneg %p63
        %p321 = pneg %p60
        %p322 = pneg %p84
        %p323 = pneg %p81
        %p324 = pneg %p105
        %p325 = pneg %p102
        %p326 = pneg %p126
        %p327 = pneg %p123
        %p328 = pneg %p147
        %p329 = pneg %p144
        %p330 = pneg %p168
        %p331 = pneg %p165
        %p332 = pneg %p189
        %p333 = pneg %p186
        %p334 = pneg %p210
        %p335 = pneg %p207
        %p336 = pneg %p236
        %p337 = pneg %p233
        %s338 = smul.u32 2, %s21
        %p339 = scmp.lt.s32.totalorder %s338, 3
        %s340 = scalar_select %p339, %s338, 3
        %s341 = smul.addr %s340, 4
        %s342 = scalar_lea.vmem %s9, %s341
        %s343 = smul.u32 2, %s21
        %p344 = scmp.lt.s32.totalorder %s343, 3
        %s345 = scalar_select %p344, %s343, 3
        %s346 = smul.addr %s345, 7
        %s347 = smul.addr %s346, 8
        %s348 = scalar_lea.vmem %s0, %s347
        %s349 = smul.u32 2, %s21
        %s350 = smul.u32 2, %s21
        %p351 = scmp.lt.s32.totalorder %s350, 3
        %s352 = scalar_select %p351, %s350, 3
        %s353 = smul.addr %s352, 4
        %s354 = scalar_lea.vmem %s9, %s353
        %s355 = smul.u32 2, %s21
        %v357 = vld [vmem:[%s348] sm:$0xff]
        %v358 = vld [vmem:[%s348 + $0x8] sm:$0xff]
        %v359 = vld [vmem:[%s348 + $0x10] sm:$0xff]
        %v360 = vld [vmem:[%s348 + $0x18] sm:$0xff]
        %v361 = vld [vmem:[%s348 + $0x20] sm:$0xff]
        %v362 = vld [vmem:[%s348 + $0x28] sm:$0xff]
        %v363 = vld [vmem:[%s348 + $0x30] sm:$0xff]
        %v364 = vld [vmem:[%s348 + $0x38] sm:$0xff]
        %v365 = vld [vmem:[%s348 + $0x40] sm:$0xff]
        %v366 = vld [vmem:[%s348 + $0x48] sm:$0xff]
        %v367 = vld [vmem:[%s348 + $0x50] sm:$0xff]
        %v368 = vld [vmem:[%s348 + $0x58] sm:$0xff]
        %v369 = vld [vmem:[%s348 + $0x60] sm:$0xff]
        %v370 = vld [vmem:[%s348 + $0x68] sm:$0xff]
        %v371 = vpack.c.bf16 %v364, %v357
        %v372 = vpack.c.bf16 %v365, %v358
        %v373 = vpack.c.bf16 %v366, %v359
        %v374 = vpack.c.bf16 %v367, %v360
        %v375 = vpack.c.bf16 %v368, %v361
        %v376 = vpack.c.bf16 %v369, %v362
        %v377 = vpack.c.bf16 %v370, %v363
        %v378 = vld [vmem:[#allocation2] sm:$0xff]
        %v379 = vld [vmem:[#allocation2 + $0x8] sm:$0xff]
        %v380 = vld [vmem:[#allocation2 + $0x10] sm:$0xff]
        %v381 = vld [vmem:[#allocation2 + $0x18] sm:$0xff]
        %v382 = vld [vmem:[#allocation2 + $0x20] sm:$0xff]
        %v383 = vld [vmem:[#allocation2 + $0x28] sm:$0xff]
        %v384 = vld [vmem:[#allocation2 + $0x30] sm:$0xff]
        %v385 = vld [vmem:[#allocation2 + $0x38] sm:$0xff]
        %v386 = vld [vmem:[#allocation2 + $0x40] sm:$0xff]
        %v387 = vld [vmem:[#allocation2 + $0x48] sm:$0xff]
        %v388 = vld [vmem:[#allocation2 + $0x50] sm:$0xff]
        %v389 = vld [vmem:[#allocation2 + $0x58] sm:$0xff]
        %v390 = vld [vmem:[#allocation2 + $0x60] sm:$0xff]
        %v391 = vld [vmem:[#allocation2 + $0x68] sm:$0xff]
        %v392 = vld [vmem:[#allocation2 + $0x70] sm:$0xff]
        %v393 = vld [vmem:[#allocation2 + $0x78] sm:$0xff]
        %v394 = vld [vmem:[#allocation2 + $0x80] sm:$0xff]
        %v395 = vld [vmem:[#allocation2 + $0x88] sm:$0xff]
        %v396 = vld [vmem:[#allocation2 + $0x90] sm:$0xff]
        %v397 = vld [vmem:[#allocation2 + $0x98] sm:$0xff]
        %v398 = vld [vmem:[#allocation2 + $0xa0] sm:$0xff]
        %v399 = vld [vmem:[#allocation2 + $0xa8] sm:$0xff]
        %v400 = vld [vmem:[#allocation2 + $0xb0] sm:$0xff]
        %v401 = vld [vmem:[#allocation2 + $0xb8] sm:$0xff]
        %v402 = vld [vmem:[#allocation2 + $0xc0] sm:$0xff]
        %v403 = vld [vmem:[#allocation2 + $0xc8] sm:$0xff]
        %v404 = vld [vmem:[#allocation2 + $0xd0] sm:$0xff]
        %v405 = vld [vmem:[#allocation2 + $0xd8] sm:$0xff]
        %v406 = vld [vmem:[#allocation2 + $0xe0] sm:$0xff]
        %v407 = vld [vmem:[#allocation2 + $0xe8] sm:$0xff]
        %v408 = vld [vmem:[#allocation2 + $0xf0] sm:$0xff]
        %v409 = vld [vmem:[#allocation2 + $0xf8] sm:$0xff]
        %v410 = vld [vmem:[#allocation2 + $0x100] sm:$0xff]
        %v411 = vld [vmem:[#allocation2 + $0x108] sm:$0xff]
        %v412 = vld [vmem:[#allocation2 + $0x110] sm:$0xff]
        %v413 = vld [vmem:[#allocation2 + $0x118] sm:$0xff]
        %v414 = vld [vmem:[#allocation2 + $0x120] sm:$0xff]
        %v415 = vld [vmem:[#allocation2 + $0x128] sm:$0xff]
        %v416 = vld [vmem:[#allocation2 + $0x130] sm:$0xff]
        %v417 = vld [vmem:[#allocation2 + $0x138] sm:$0xff]
        %v418 = vld [vmem:[#allocation2 + $0x140] sm:$0xff]
        %v419 = vld [vmem:[#allocation2 + $0x148] sm:$0xff]
        %v420 = vld [vmem:[#allocation2 + $0x150] sm:$0xff]
        %v421 = vld [vmem:[#allocation2 + $0x158] sm:$0xff]
        %v422 = vld [vmem:[#allocation2 + $0x160] sm:$0xff]
        %v423 = vld [vmem:[#allocation2 + $0x168] sm:$0xff]
        %v424 = vld [vmem:[#allocation2 + $0x170] sm:$0xff]
        %v425 = vld [vmem:[#allocation2 + $0x178] sm:$0xff]
        %v426 = vld [vmem:[#allocation2 + $0x180] sm:$0xff]
        %v427 = vld [vmem:[#allocation2 + $0x188] sm:$0xff]
        %v428 = vld [vmem:[#allocation2 + $0x190] sm:$0xff]
        %v429 = vld [vmem:[#allocation2 + $0x198] sm:$0xff]
        %v430 = vld [vmem:[#allocation2 + $0x1a0] sm:$0xff]
        %v431 = vld [vmem:[#allocation2 + $0x1a8] sm:$0xff]
        %v432 = vld [vmem:[#allocation2 + $0x1b0] sm:$0xff]
        %v433 = vld [vmem:[#allocation2 + $0x1b8] sm:$0xff]
        %v434 = vld [vmem:[#allocation2 + $0x1c0] sm:$0xff]
        %v435 = vld [vmem:[#allocation2 + $0x1c8] sm:$0xff]
        %v436 = vld [vmem:[#allocation2 + $0x1d0] sm:$0xff]
        %v437 = vld [vmem:[#allocation2 + $0x1d8] sm:$0xff]
        %v438 = vld [vmem:[#allocation2 + $0x1e0] sm:$0xff]
        %v439 = vld [vmem:[#allocation2 + $0x1e8] sm:$0xff]
        %v440 = vld [vmem:[#allocation2 + $0x1f0] sm:$0xff]
        %v441 = vld [vmem:[#allocation2 + $0x1f8] sm:$0xff]
        %v442 = vld [vmem:[#allocation2 + $0x200] sm:$0xff]
        %v443 = vld [vmem:[#allocation2 + $0x208] sm:$0xff]
        %v444 = vld [vmem:[#allocation2 + $0x210] sm:$0xff]
        %v445 = vld [vmem:[#allocation2 + $0x218] sm:$0xff]
        %v446 = vld [vmem:[#allocation2 + $0x220] sm:$0xff]
        %v447 = vld [vmem:[#allocation2 + $0x228] sm:$0xff]
        %v448 = vld [vmem:[#allocation2 + $0x230] sm:$0xff]
        %v449 = vld [vmem:[#allocation2 + $0x238] sm:$0xff]
        %v450 = vld [vmem:[#allocation2 + $0x240] sm:$0xff]
        %v451 = vld [vmem:[#allocation2 + $0x248] sm:$0xff]
        %v452 = vld [vmem:[#allocation2 + $0x250] sm:$0xff]
        %v453 = vld [vmem:[#allocation2 + $0x258] sm:$0xff]
        %v454 = vld [vmem:[#allocation2 + $0x260] sm:$0xff]
        %v455 = vld [vmem:[#allocation2 + $0x268] sm:$0xff]
        %v456 = vld [vmem:[#allocation2 + $0x270] sm:$0xff]
        %v457 = vld [vmem:[#allocation2 + $0x278] sm:$0xff]
        %v458 = vld [vmem:[#allocation2 + $0x280] sm:$0xff]
        %v459 = vld [vmem:[#allocation2 + $0x288] sm:$0xff]
        %v460 = vld [vmem:[#allocation2 + $0x290] sm:$0xff]
        %v461 = vld [vmem:[#allocation2 + $0x298] sm:$0xff]
        %v462 = vld [vmem:[#allocation2 + $0x2a0] sm:$0xff]
        %v463 = vld [vmem:[#allocation2 + $0x2a8] sm:$0xff]
        %v464 = vld [vmem:[#allocation2 + $0x2b0] sm:$0xff]
        %v465 = vld [vmem:[#allocation2 + $0x2b8] sm:$0xff]
        %v466 = vld [vmem:[#allocation2 + $0x2c0] sm:$0xff]
        %v467 = vld [vmem:[#allocation2 + $0x2c8] sm:$0xff]
        %v468 = vld [vmem:[#allocation2 + $0x2d0] sm:$0xff]
        %v469 = vld [vmem:[#allocation2 + $0x2d8] sm:$0xff]
        %v470 = vld [vmem:[#allocation2 + $0x2e0] sm:$0xff]
        %v471 = vld [vmem:[#allocation2 + $0x2e8] sm:$0xff]
        %v472 = vld [vmem:[#allocation2 + $0x2f0] sm:$0xff]
        %v473 = vld [vmem:[#allocation2 + $0x2f8] sm:$0xff]
        %v474 = vld [vmem:[#allocation2 + $0x300] sm:$0xff]
        %v475 = vld [vmem:[#allocation2 + $0x308] sm:$0xff]
        %v476 = vld [vmem:[#allocation2 + $0x310] sm:$0xff]
        %v477 = vld [vmem:[#allocation2 + $0x318] sm:$0xff]
        %v478 = vld [vmem:[#allocation2 + $0x320] sm:$0xff]
        %v479 = vld [vmem:[#allocation2 + $0x328] sm:$0xff]
        %v480 = vld [vmem:[#allocation2 + $0x330] sm:$0xff]
        %v481 = vld [vmem:[#allocation2 + $0x338] sm:$0xff]
        %v482 = vld [vmem:[#allocation2 + $0x340] sm:$0xff]
        %v483 = vld [vmem:[#allocation2 + $0x348] sm:$0xff]
        %v484 = vld [vmem:[#allocation2 + $0x350] sm:$0xff]
        %v485 = vld [vmem:[#allocation2 + $0x358] sm:$0xff]
        %v486 = vld [vmem:[#allocation2 + $0x360] sm:$0xff]
        %v487 = vld [vmem:[#allocation2 + $0x368] sm:$0xff]
        %v488 = vld [vmem:[#allocation2 + $0x370] sm:$0xff]
        %v489 = vld [vmem:[#allocation2 + $0x378] sm:$0xff]
        %v490 = vld [vmem:[#allocation2 + $0x380] sm:$0xff]
        %v491 = vld [vmem:[#allocation2 + $0x388] sm:$0xff]
        %v492 = vld [vmem:[#allocation2 + $0x390] sm:$0xff]
        %v493 = vld [vmem:[#allocation2 + $0x398] sm:$0xff]
        %v494 = vld [vmem:[#allocation2 + $0x3a0] sm:$0xff]
        %v495 = vld [vmem:[#allocation2 + $0x3a8] sm:$0xff]
        %v496 = vld [vmem:[#allocation2 + $0x3b0] sm:$0xff]
        %v497 = vld [vmem:[#allocation2 + $0x3b8] sm:$0xff]
        %v498 = vld [vmem:[#allocation2 + $0x3c0] sm:$0xff]
        %v499 = vld [vmem:[#allocation2 + $0x3c8] sm:$0xff]
        %v500 = vld [vmem:[#allocation2 + $0x3d0] sm:$0xff]
        %v501 = vld [vmem:[#allocation2 + $0x3d8] sm:$0xff]
        %v502 = vld [vmem:[#allocation2 + $0x3e0] sm:$0xff]
        %v503 = vld [vmem:[#allocation2 + $0x3e8] sm:$0xff]
        %v504 = vld [vmem:[#allocation2 + $0x3f0] sm:$0xff]
        %v505 = vld [vmem:[#allocation2 + $0x3f8] sm:$0xff]
        %v506 = vld [vmem:[#allocation2 + $0x400] sm:$0xff]
        %v507 = vld [vmem:[#allocation2 + $0x408] sm:$0xff]
        %v508 = vld [vmem:[#allocation2 + $0x410] sm:$0xff]
        %v509 = vld [vmem:[#allocation2 + $0x418] sm:$0xff]
        %v510 = vld [vmem:[#allocation2 + $0x420] sm:$0xff]
        %v511 = vld [vmem:[#allocation2 + $0x428] sm:$0xff]
        %v512 = vld [vmem:[#allocation2 + $0x430] sm:$0xff]
        %v513 = vld [vmem:[#allocation2 + $0x438] sm:$0xff]
        %v514 = vld [vmem:[#allocation2 + $0x440] sm:$0xff]
        %v515 = vld [vmem:[#allocation2 + $0x448] sm:$0xff]
        %v516 = vld [vmem:[#allocation2 + $0x450] sm:$0xff]
        %v517 = vld [vmem:[#allocation2 + $0x458] sm:$0xff]
        %v518 = vld [vmem:[#allocation2 + $0x460] sm:$0xff]
        %v519 = vld [vmem:[#allocation2 + $0x468] sm:$0xff]
        %v520 = vld [vmem:[#allocation2 + $0x470] sm:$0xff]
        %v521 = vld [vmem:[#allocation2 + $0x478] sm:$0xff]
        %v522 = vld [vmem:[#allocation2 + $0x480] sm:$0xff]
        %v523 = vld [vmem:[#allocation2 + $0x488] sm:$0xff]
        %v524 = vld [vmem:[#allocation2 + $0x490] sm:$0xff]
        %v525 = vld [vmem:[#allocation2 + $0x498] sm:$0xff]
        %v526 = vld [vmem:[#allocation2 + $0x4a0] sm:$0xff]
        %v527 = vld [vmem:[#allocation2 + $0x4a8] sm:$0xff]
        %v528 = vld [vmem:[#allocation2 + $0x4b0] sm:$0xff]
        %v529 = vld [vmem:[#allocation2 + $0x4b8] sm:$0xff]
        %v530 = vld [vmem:[#allocation2 + $0x4c0] sm:$0xff]
        %v531 = vld [vmem:[#allocation2 + $0x4c8] sm:$0xff]
        %v532 = vld [vmem:[#allocation2 + $0x4d0] sm:$0xff]
        %v533 = vld [vmem:[#allocation2 + $0x4d8] sm:$0xff]
        %v534 = vld [vmem:[#allocation2 + $0x4e0] sm:$0xff]
        %v535 = vld [vmem:[#allocation2 + $0x4e8] sm:$0xff]
        %v536 = vld [vmem:[#allocation2 + $0x4f0] sm:$0xff]
        %v537 = vld [vmem:[#allocation2 + $0x4f8] sm:$0xff]
        %v538 = vld [vmem:[#allocation2 + $0x500] sm:$0xff]
        %v539 = vld [vmem:[#allocation2 + $0x508] sm:$0xff]
        %v540 = vld [vmem:[#allocation2 + $0x510] sm:$0xff]
        %v541 = vld [vmem:[#allocation2 + $0x518] sm:$0xff]
        %v542 = vld [vmem:[#allocation2 + $0x520] sm:$0xff]
        %v543 = vld [vmem:[#allocation2 + $0x528] sm:$0xff]
        %v544 = vld [vmem:[#allocation2 + $0x530] sm:$0xff]
        %v545 = vld [vmem:[#allocation2 + $0x538] sm:$0xff]
        %v546 = vld [vmem:[#allocation2 + $0x540] sm:$0xff]
        %v547 = vld [vmem:[#allocation2 + $0x548] sm:$0xff]
        %v548 = vld [vmem:[#allocation2 + $0x550] sm:$0xff]
        %v549 = vld [vmem:[#allocation2 + $0x558] sm:$0xff]
        %v550 = vld [vmem:[#allocation2 + $0x560] sm:$0xff]
        %v551 = vld [vmem:[#allocation2 + $0x568] sm:$0xff]
        %v552 = vld [vmem:[#allocation2 + $0x570] sm:$0xff]
        %v553 = vld [vmem:[#allocation2 + $0x578] sm:$0xff]
        %v554 = vld [vmem:[#allocation2 + $0x580] sm:$0xff]
        %v555 = vld [vmem:[#allocation2 + $0x588] sm:$0xff]
        %v556 = vld [vmem:[#allocation2 + $0x590] sm:$0xff]
        %v557 = vld [vmem:[#allocation2 + $0x598] sm:$0xff]
        %v558 = vld [vmem:[#allocation2 + $0x5a0] sm:$0xff]
        %v559 = vld [vmem:[#allocation2 + $0x5a8] sm:$0xff]
        %v560 = vld [vmem:[#allocation2 + $0x5b0] sm:$0xff]
        %v561 = vld [vmem:[#allocation2 + $0x5b8] sm:$0xff]
        %v562 = vld [vmem:[#allocation2 + $0x5c0] sm:$0xff]
        %v563 = vld [vmem:[#allocation2 + $0x5c8] sm:$0xff]
        %v564 = vld [vmem:[#allocation2 + $0x5d0] sm:$0xff]
        %v565 = vld [vmem:[#allocation2 + $0x5d8] sm:$0xff]
        %v566 = vld [vmem:[#allocation2 + $0x5e0] sm:$0xff]
        %v567 = vld [vmem:[#allocation2 + $0x5e8] sm:$0xff]
        %v568 = vld [vmem:[#allocation2 + $0x5f0] sm:$0xff]
        %v569 = vld [vmem:[#allocation2 + $0x5f8] sm:$0xff]
        %v570 = vld [vmem:[#allocation2 + $0x600] sm:$0xff]
        %v571 = vld [vmem:[#allocation2 + $0x608] sm:$0xff]
        %v572 = vld [vmem:[#allocation2 + $0x610] sm:$0xff]
        %v573 = vld [vmem:[#allocation2 + $0x618] sm:$0xff]
        %v574 = vld [vmem:[%s2] sm:$0xf]
        %v576 = vperm.slane %v574, 0
        %v577 = vperm.slane %v574, 1
        %v578 = vperm.slane %v574, 2
        %v579 = vperm.slane %v574, 3
        %v780 = vunpack.c.l.b16 %v378
        %v781 = vunpack.c.h.b16 %v378
        %v782 = vunpack.c.l.b16 %v379
        %v783 = vunpack.c.h.b16 %v379
        %v784 = vunpack.c.l.b16 %v380
        %v785 = vunpack.c.h.b16 %v380
        %v786 = vunpack.c.l.b16 %v381
        %v787 = vunpack.c.h.b16 %v381
        %v788 = vunpack.c.l.b16 %v382
        %v789 = vunpack.c.h.b16 %v382
        %v790 = vunpack.c.l.b16 %v383
        %v791 = vunpack.c.h.b16 %v383
        %v792 = vunpack.c.l.b16 %v384
        %v793 = vunpack.c.h.b16 %v384
        %v794 = vunpack.c.l.b16 %v385
        %v795 = vunpack.c.h.b16 %v385
        %v796 = vunpack.c.l.b16 %v386
        %v797 = vunpack.c.h.b16 %v386
        %v798 = vunpack.c.l.b16 %v387
        %v799 = vunpack.c.h.b16 %v387
        %v800 = vunpack.c.l.b16 %v388
        %v801 = vunpack.c.h.b16 %v388
        %v802 = vunpack.c.l.b16 %v389
        %v803 = vunpack.c.h.b16 %v389
        %v804 = vunpack.c.l.b16 %v390
        %v805 = vunpack.c.h.b16 %v390
        %v806 = vunpack.c.l.b16 %v391
        %v807 = vunpack.c.h.b16 %v391
        %v808 = vunpack.c.l.b16 %v392
        %v809 = vunpack.c.h.b16 %v392
        %v810 = vunpack.c.l.b16 %v393
        %v811 = vunpack.c.h.b16 %v393
        %v812 = vunpack.c.l.b16 %v394
        %v813 = vunpack.c.h.b16 %v394
        %v814 = vunpack.c.l.b16 %v395
        %v815 = vunpack.c.h.b16 %v395
        %v816 = vunpack.c.l.b16 %v396
        %v817 = vunpack.c.h.b16 %v396
        %v818 = vunpack.c.l.b16 %v397
        %v819 = vunpack.c.h.b16 %v397
        %v820 = vunpack.c.l.b16 %v398
        %v821 = vunpack.c.h.b16 %v398
        %v822 = vunpack.c.l.b16 %v399
        %v823 = vunpack.c.h.b16 %v399
        %v824 = vunpack.c.l.b16 %v400
        %v825 = vunpack.c.h.b16 %v400
        %v826 = vunpack.c.l.b16 %v401
        %v827 = vunpack.c.h.b16 %v401
        %v828 = vunpack.c.l.b16 %v402
        %v829 = vunpack.c.h.b16 %v402
        %v830 = vunpack.c.l.b16 %v403
        %v831 = vunpack.c.h.b16 %v403
        %v832 = vunpack.c.l.b16 %v404
        %v833 = vunpack.c.h.b16 %v404
        %v834 = vunpack.c.l.b16 %v405
        %v835 = vunpack.c.h.b16 %v405
        %v836 = vunpack.c.l.b16 %v406
        %v837 = vunpack.c.h.b16 %v406
        %v838 = vunpack.c.l.b16 %v407
        %v839 = vunpack.c.h.b16 %v407
        %v840 = vunpack.c.l.b16 %v408
        %v841 = vunpack.c.h.b16 %v408
        %v842 = vunpack.c.l.b16 %v409
        %v843 = vunpack.c.h.b16 %v409
        %v844 = vunpack.c.l.b16 %v410
        %v845 = vunpack.c.h.b16 %v410
        %v846 = vunpack.c.l.b16 %v411
        %v847 = vunpack.c.h.b16 %v411
        %v848 = vunpack.c.l.b16 %v412
        %v849 = vunpack.c.h.b16 %v412
        %v850 = vunpack.c.l.b16 %v413
        %v851 = vunpack.c.h.b16 %v413
        %v852 = vunpack.c.l.b16 %v414
        %v853 = vunpack.c.h.b16 %v414
        %v854 = vunpack.c.l.b16 %v415
        %v855 = vunpack.c.h.b16 %v415
        %v856 = vunpack.c.l.b16 %v416
        %v857 = vunpack.c.h.b16 %v416
        %v858 = vunpack.c.l.b16 %v417
        %v859 = vunpack.c.h.b16 %v417
        %v860 = vunpack.c.l.b16 %v418
        %v861 = vunpack.c.h.b16 %v418
        %v862 = vunpack.c.l.b16 %v419
        %v863 = vunpack.c.h.b16 %v419
        %v864 = vunpack.c.l.b16 %v420
        %v865 = vunpack.c.h.b16 %v420
        %v866 = vunpack.c.l.b16 %v421
        %v867 = vunpack.c.h.b16 %v421
        %v868 = vunpack.c.l.b16 %v422
        %v869 = vunpack.c.h.b16 %v422
        %v870 = vunpack.c.l.b16 %v423
        %v871 = vunpack.c.h.b16 %v423
        %v872 = vunpack.c.l.b16 %v424
        %v873 = vunpack.c.h.b16 %v424
        %v874 = vunpack.c.l.b16 %v425
        %v875 = vunpack.c.h.b16 %v425
        %v876 = vunpack.c.l.b16 %v426
        %v877 = vunpack.c.h.b16 %v426
        %v878 = vunpack.c.l.b16 %v427
        %v879 = vunpack.c.h.b16 %v427
        %v880 = vunpack.c.l.b16 %v428
        %v881 = vunpack.c.h.b16 %v428
        %v882 = vunpack.c.l.b16 %v429
        %v883 = vunpack.c.h.b16 %v429
        %v884 = vunpack.c.l.b16 %v430
        %v885 = vunpack.c.h.b16 %v430
        %v886 = vunpack.c.l.b16 %v431
        %v887 = vunpack.c.h.b16 %v431
        %v888 = vunpack.c.l.b16 %v432
        %v889 = vunpack.c.h.b16 %v432
        %v890 = vunpack.c.l.b16 %v433
        %v891 = vunpack.c.h.b16 %v433
        %v892 = vunpack.c.l.b16 %v434
        %v893 = vunpack.c.h.b16 %v434
        %v894 = vunpack.c.l.b16 %v435
        %v895 = vunpack.c.h.b16 %v435
        %v896 = vunpack.c.l.b16 %v436
        %v897 = vunpack.c.h.b16 %v436
        %v898 = vunpack.c.l.b16 %v437
        %v899 = vunpack.c.h.b16 %v437
        %v900 = vunpack.c.l.b16 %v438
        %v901 = vunpack.c.h.b16 %v438
        %v902 = vunpack.c.l.b16 %v439
        %v903 = vunpack.c.h.b16 %v439
        %v904 = vunpack.c.l.b16 %v440
        %v905 = vunpack.c.h.b16 %v440
        %v906 = vunpack.c.l.b16 %v441
        %v907 = vunpack.c.h.b16 %v441
        %v908 = vunpack.c.l.b16 %v442
        %v909 = vunpack.c.h.b16 %v442
        %v910 = vunpack.c.l.b16 %v443
        %v911 = vunpack.c.h.b16 %v443
        %v912 = vunpack.c.l.b16 %v444
        %v913 = vunpack.c.h.b16 %v444
        %v914 = vunpack.c.l.b16 %v445
        %v915 = vunpack.c.h.b16 %v445
        %v916 = vunpack.c.l.b16 %v446
        %v917 = vunpack.c.h.b16 %v446
        %v918 = vunpack.c.l.b16 %v447
        %v919 = vunpack.c.h.b16 %v447
        %v920 = vunpack.c.l.b16 %v448
        %v921 = vunpack.c.h.b16 %v448
        %v922 = vunpack.c.l.b16 %v449
        %v923 = vunpack.c.h.b16 %v449
        %v924 = vunpack.c.l.b16 %v450
        %v925 = vunpack.c.h.b16 %v450
        %v926 = vunpack.c.l.b16 %v451
        %v927 = vunpack.c.h.b16 %v451
        %v928 = vunpack.c.l.b16 %v452
        %v929 = vunpack.c.h.b16 %v452
        %v930 = vunpack.c.l.b16 %v453
        %v931 = vunpack.c.h.b16 %v453
        %v932 = vunpack.c.l.b16 %v454
        %v933 = vunpack.c.h.b16 %v454
        %v934 = vunpack.c.l.b16 %v455
        %v935 = vunpack.c.h.b16 %v455
        %v936 = vunpack.c.l.b16 %v456
        %v937 = vunpack.c.h.b16 %v456
        %v938 = vunpack.c.l.b16 %v457
        %v939 = vunpack.c.h.b16 %v457
        %v940 = vunpack.c.l.b16 %v458
        %v941 = vunpack.c.h.b16 %v458
        %v942 = vunpack.c.l.b16 %v459
        %v943 = vunpack.c.h.b16 %v459
        %v944 = vunpack.c.l.b16 %v460
        %v945 = vunpack.c.h.b16 %v460
        %v946 = vunpack.c.l.b16 %v461
        %v947 = vunpack.c.h.b16 %v461
        %v948 = vunpack.c.l.b16 %v462
        %v949 = vunpack.c.h.b16 %v462
        %v950 = vunpack.c.l.b16 %v463
        %v951 = vunpack.c.h.b16 %v463
        %v952 = vunpack.c.l.b16 %v464
        %v953 = vunpack.c.h.b16 %v464
        %v954 = vunpack.c.l.b16 %v465
        %v955 = vunpack.c.h.b16 %v465
        %v956 = vunpack.c.l.b16 %v466
        %v957 = vunpack.c.h.b16 %v466
        %v958 = vunpack.c.l.b16 %v467
        %v959 = vunpack.c.h.b16 %v467
        %v960 = vunpack.c.l.b16 %v468
        %v961 = vunpack.c.h.b16 %v468
        %v962 = vunpack.c.l.b16 %v469
        %v963 = vunpack.c.h.b16 %v469
        %v964 = vunpack.c.l.b16 %v470
        %v965 = vunpack.c.h.b16 %v470
        %v966 = vunpack.c.l.b16 %v471
        %v967 = vunpack.c.h.b16 %v471
        %v968 = vunpack.c.l.b16 %v472
        %v969 = vunpack.c.h.b16 %v472
        %v970 = vunpack.c.l.b16 %v473
        %v971 = vunpack.c.h.b16 %v473
        %v972 = vunpack.c.l.b16 %v474
        %v973 = vunpack.c.h.b16 %v474
        %v974 = vunpack.c.l.b16 %v475
        %v975 = vunpack.c.h.b16 %v475
        %v976 = vunpack.c.l.b16 %v476
        %v977 = vunpack.c.h.b16 %v476
        %v978 = vunpack.c.l.b16 %v477
        %v979 = vunpack.c.h.b16 %v477
        %v980 = vunpack.c.l.b16 %v478
        %v981 = vunpack.c.h.b16 %v478
        %v982 = vunpack.c.l.b16 %v479
        %v983 = vunpack.c.h.b16 %v479
        %v984 = vunpack.c.l.b16 %v480
        %v985 = vunpack.c.h.b16 %v480
        %v986 = vunpack.c.l.b16 %v481
        %v987 = vunpack.c.h.b16 %v481
        %v988 = vunpack.c.l.b16 %v482
        %v989 = vunpack.c.h.b16 %v482
        %v990 = vunpack.c.l.b16 %v483
        %v991 = vunpack.c.h.b16 %v483
        %v992 = vunpack.c.l.b16 %v484
        %v993 = vunpack.c.h.b16 %v484
        %v994 = vunpack.c.l.b16 %v485
        %v995 = vunpack.c.h.b16 %v485
        %v996 = vunpack.c.l.b16 %v486
        %v997 = vunpack.c.h.b16 %v486
        %v998 = vunpack.c.l.b16 %v487
        %v999 = vunpack.c.h.b16 %v487
        %v1000 = vunpack.c.l.b16 %v488
        %v1001 = vunpack.c.h.b16 %v488
        %v1002 = vunpack.c.l.b16 %v489
        %v1003 = vunpack.c.h.b16 %v489
        %v1004 = vunpack.c.l.b16 %v490
        %v1005 = vunpack.c.h.b16 %v490
        %v1006 = vunpack.c.l.b16 %v491
        %v1007 = vunpack.c.h.b16 %v491
        %v1008 = vunpack.c.l.b16 %v492
        %v1009 = vunpack.c.h.b16 %v492
        %v1010 = vunpack.c.l.b16 %v493
        %v1011 = vunpack.c.h.b16 %v493
        %v1012 = vunpack.c.l.b16 %v494
        %v1013 = vunpack.c.h.b16 %v494
        %v1014 = vunpack.c.l.b16 %v495
        %v1015 = vunpack.c.h.b16 %v495
        %v1016 = vunpack.c.l.b16 %v496
        %v1017 = vunpack.c.h.b16 %v496
        %v1018 = vunpack.c.l.b16 %v497
        %v1019 = vunpack.c.h.b16 %v497
        %v1020 = vunpack.c.l.b16 %v498
        %v1021 = vunpack.c.h.b16 %v498
        %v1022 = vunpack.c.l.b16 %v499
        %v1023 = vunpack.c.h.b16 %v499
        %v1024 = vunpack.c.l.b16 %v500
        %v1025 = vunpack.c.h.b16 %v500
        %v1026 = vunpack.c.l.b16 %v501
        %v1027 = vunpack.c.h.b16 %v501
        %v1028 = vunpack.c.l.b16 %v502
        %v1029 = vunpack.c.h.b16 %v502
        %v1030 = vunpack.c.l.b16 %v503
        %v1031 = vunpack.c.h.b16 %v503
        %v1032 = vunpack.c.l.b16 %v504
        %v1033 = vunpack.c.h.b16 %v504
        %v1034 = vunpack.c.l.b16 %v505
        %v1035 = vunpack.c.h.b16 %v505
        %v1036 = vunpack.c.l.b16 %v506
        %v1037 = vunpack.c.h.b16 %v506
        %v1038 = vunpack.c.l.b16 %v507
        %v1039 = vunpack.c.h.b16 %v507
        %v1040 = vunpack.c.l.b16 %v508
        %v1041 = vunpack.c.h.b16 %v508
        %v1042 = vunpack.c.l.b16 %v509
        %v1043 = vunpack.c.h.b16 %v509
        %v1044 = vunpack.c.l.b16 %v510
        %v1045 = vunpack.c.h.b16 %v510
        %v1046 = vunpack.c.l.b16 %v511
        %v1047 = vunpack.c.h.b16 %v511
        %v1048 = vunpack.c.l.b16 %v512
        %v1049 = vunpack.c.h.b16 %v512
        %v1050 = vunpack.c.l.b16 %v513
        %v1051 = vunpack.c.h.b16 %v513
        %v1052 = vunpack.c.l.b16 %v514
        %v1053 = vunpack.c.h.b16 %v514
        %v1054 = vunpack.c.l.b16 %v515
        %v1055 = vunpack.c.h.b16 %v515
        %v1056 = vunpack.c.l.b16 %v516
        %v1057 = vunpack.c.h.b16 %v516
        %v1058 = vunpack.c.l.b16 %v517
        %v1059 = vunpack.c.h.b16 %v517
        %v1060 = vunpack.c.l.b16 %v518
        %v1061 = vunpack.c.h.b16 %v518
        %v1062 = vunpack.c.l.b16 %v519
        %v1063 = vunpack.c.h.b16 %v519
        %v1064 = vunpack.c.l.b16 %v520
        %v1065 = vunpack.c.h.b16 %v520
        %v1066 = vunpack.c.l.b16 %v521
        %v1067 = vunpack.c.h.b16 %v521
        %v1068 = vunpack.c.l.b16 %v522
        %v1069 = vunpack.c.h.b16 %v522
        %v1070 = vunpack.c.l.b16 %v523
        %v1071 = vunpack.c.h.b16 %v523
        %v1072 = vunpack.c.l.b16 %v524
        %v1073 = vunpack.c.h.b16 %v524
        %v1074 = vunpack.c.l.b16 %v525
        %v1075 = vunpack.c.h.b16 %v525
        %v1076 = vunpack.c.l.b16 %v526
        %v1077 = vunpack.c.h.b16 %v526
        %v1078 = vunpack.c.l.b16 %v527
        %v1079 = vunpack.c.h.b16 %v527
        %v1080 = vunpack.c.l.b16 %v528
        %v1081 = vunpack.c.h.b16 %v528
        %v1082 = vunpack.c.l.b16 %v529
        %v1083 = vunpack.c.h.b16 %v529
        %v1084 = vunpack.c.l.b16 %v530
        %v1085 = vunpack.c.h.b16 %v530
        %v1086 = vunpack.c.l.b16 %v531
        %v1087 = vunpack.c.h.b16 %v531
        %v1088 = vunpack.c.l.b16 %v532
        %v1089 = vunpack.c.h.b16 %v532
        %v1090 = vunpack.c.l.b16 %v533
        %v1091 = vunpack.c.h.b16 %v533
        %v1092 = vunpack.c.l.b16 %v534
        %v1093 = vunpack.c.h.b16 %v534
        %v1094 = vunpack.c.l.b16 %v535
        %v1095 = vunpack.c.h.b16 %v535
        %v1096 = vunpack.c.l.b16 %v536
        %v1097 = vunpack.c.h.b16 %v536
        %v1098 = vunpack.c.l.b16 %v537
        %v1099 = vunpack.c.h.b16 %v537
        %v1100 = vunpack.c.l.b16 %v538
        %v1101 = vunpack.c.h.b16 %v538
        %v1102 = vunpack.c.l.b16 %v539
        %v1103 = vunpack.c.h.b16 %v539
        %v1104 = vunpack.c.l.b16 %v540
        %v1105 = vunpack.c.h.b16 %v540
        %v1106 = vunpack.c.l.b16 %v541
        %v1107 = vunpack.c.h.b16 %v541
        %v1108 = vunpack.c.l.b16 %v542
        %v1109 = vunpack.c.h.b16 %v542
        %v1110 = vunpack.c.l.b16 %v543
        %v1111 = vunpack.c.h.b16 %v543
        %v1112 = vunpack.c.l.b16 %v544
        %v1113 = vunpack.c.h.b16 %v544
        %v1114 = vunpack.c.l.b16 %v545
        %v1115 = vunpack.c.h.b16 %v545
        %v1116 = vunpack.c.l.b16 %v546
        %v1117 = vunpack.c.h.b16 %v546
        %v1118 = vunpack.c.l.b16 %v547
        %v1119 = vunpack.c.h.b16 %v547
        %v1120 = vunpack.c.l.b16 %v548
        %v1121 = vunpack.c.h.b16 %v548
        %v1122 = vunpack.c.l.b16 %v549
        %v1123 = vunpack.c.h.b16 %v549
        %v1124 = vunpack.c.l.b16 %v550
        %v1125 = vunpack.c.h.b16 %v550
        %v1126 = vunpack.c.l.b16 %v551
        %v1127 = vunpack.c.h.b16 %v551
        %v1128 = vunpack.c.l.b16 %v552
        %v1129 = vunpack.c.h.b16 %v552
        %v1130 = vunpack.c.l.b16 %v553
        %v1131 = vunpack.c.h.b16 %v553
        %v1132 = vunpack.c.l.b16 %v554
        %v1133 = vunpack.c.h.b16 %v554
        %v1134 = vunpack.c.l.b16 %v555
        %v1135 = vunpack.c.h.b16 %v555
        %v1136 = vunpack.c.l.b16 %v556
        %v1137 = vunpack.c.h.b16 %v556
        %v1138 = vunpack.c.l.b16 %v557
        %v1139 = vunpack.c.h.b16 %v557
        %v1140 = vunpack.c.l.b16 %v558
        %v1141 = vunpack.c.h.b16 %v558
        %v1142 = vunpack.c.l.b16 %v559
        %v1143 = vunpack.c.h.b16 %v559
        %v1144 = vunpack.c.l.b16 %v560
        %v1145 = vunpack.c.h.b16 %v560
        %v1146 = vunpack.c.l.b16 %v561
        %v1147 = vunpack.c.h.b16 %v561
        %v1148 = vunpack.c.l.b16 %v562
        %v1149 = vunpack.c.h.b16 %v562
        %v1150 = vunpack.c.l.b16 %v563
        %v1151 = vunpack.c.h.b16 %v563
        %v1152 = vunpack.c.l.b16 %v564
        %v1153 = vunpack.c.h.b16 %v564
        %v1154 = vunpack.c.l.b16 %v565
        %v1155 = vunpack.c.h.b16 %v565
        %v1156 = vunpack.c.l.b16 %v566
        %v1157 = vunpack.c.h.b16 %v566
        %v1158 = vunpack.c.l.b16 %v567
        %v1159 = vunpack.c.h.b16 %v567
        %v1160 = vunpack.c.l.b16 %v568
        %v1161 = vunpack.c.h.b16 %v568
        %v1162 = vunpack.c.l.b16 %v569
        %v1163 = vunpack.c.h.b16 %v569
        %v1164 = vunpack.c.l.b16 %v570
        %v1165 = vunpack.c.h.b16 %v570
        %v1166 = vunpack.c.l.b16 %v571
        %v1167 = vunpack.c.h.b16 %v571
        %v1168 = vunpack.c.l.b16 %v572
        %v1169 = vunpack.c.h.b16 %v572
        %v1170 = vunpack.c.l.b16 %v573
        %v1171 = vunpack.c.h.b16 %v573
        %v1172 = vpack.c.b16 %v784, %v780
        %v1173 = vpack.c.b16 %v785, %v781
        %v1174 = vpack.c.b16 %v786, %v782
        %v1175 = vpack.c.b16 %v787, %v783
        %v1176 = vpack.c.b16 %v792, %v788
        %v1177 = vpack.c.b16 %v793, %v789
        %v1178 = vpack.c.b16 %v794, %v790
        %v1179 = vpack.c.b16 %v795, %v791
        %v1180 = vpack.c.b16 %v800, %v796
        %v1181 = vpack.c.b16 %v801, %v797
        %v1182 = vpack.c.b16 %v802, %v798
        %v1183 = vpack.c.b16 %v803, %v799
        %v1184 = vpack.c.b16 %v808, %v804
        %v1185 = vpack.c.b16 %v809, %v805
        %v1186 = vpack.c.b16 %v810, %v806
        %v1187 = vpack.c.b16 %v811, %v807
        %v1188 = vpack.c.b16 %v816, %v812
        %v1189 = vpack.c.b16 %v817, %v813
        %v1190 = vpack.c.b16 %v818, %v814
        %v1191 = vpack.c.b16 %v819, %v815
        %v1192 = vpack.c.b16 %v824, %v820
        %v1193 = vpack.c.b16 %v825, %v821
        %v1194 = vpack.c.b16 %v826, %v822
        %v1195 = vpack.c.b16 %v827, %v823
        %v1196 = vpack.c.b16 %v832, %v828
        %v1197 = vpack.c.b16 %v833, %v829
        %v1198 = vpack.c.b16 %v834, %v830
        %v1199 = vpack.c.b16 %v835, %v831
        %v1200 = vpack.c.b16 %v840, %v836
        %v1201 = vpack.c.b16 %v841, %v837
        %v1202 = vpack.c.b16 %v842, %v838
        %v1203 = vpack.c.b16 %v843, %v839
        %v1204 = vpack.c.b16 %v848, %v844
        %v1205 = vpack.c.b16 %v849, %v845
        %v1206 = vpack.c.b16 %v850, %v846
        %v1207 = vpack.c.b16 %v851, %v847
        %v1208 = vpack.c.b16 %v856, %v852
        %v1209 = vpack.c.b16 %v857, %v853
        %v1210 = vpack.c.b16 %v858, %v854
        %v1211 = vpack.c.b16 %v859, %v855
        %v1212 = vpack.c.b16 %v864, %v860
        %v1213 = vpack.c.b16 %v865, %v861
        %v1214 = vpack.c.b16 %v866, %v862
        %v1215 = vpack.c.b16 %v867, %v863
        %v1216 = vpack.c.b16 %v872, %v868
        %v1217 = vpack.c.b16 %v873, %v869
        %v1218 = vpack.c.b16 %v874, %v870
        %v1219 = vpack.c.b16 %v875, %v871
        %v1220 = vpack.c.b16 %v880, %v876
        %v1221 = vpack.c.b16 %v881, %v877
        %v1222 = vpack.c.b16 %v882, %v878
        %v1223 = vpack.c.b16 %v883, %v879
        %v1224 = vpack.c.b16 %v888, %v884
        %v1225 = vpack.c.b16 %v889, %v885
        %v1226 = vpack.c.b16 %v890, %v886
        %v1227 = vpack.c.b16 %v891, %v887
        %v1228 = vpack.c.b16 %v896, %v892
        %v1229 = vpack.c.b16 %v897, %v893
        %v1230 = vpack.c.b16 %v898, %v894
        %v1231 = vpack.c.b16 %v899, %v895
        %v1232 = vpack.c.b16 %v904, %v900
        %v1233 = vpack.c.b16 %v905, %v901
        %v1234 = vpack.c.b16 %v906, %v902
        %v1235 = vpack.c.b16 %v907, %v903
        %v1236 = vpack.c.b16 %v912, %v908
        %v1237 = vpack.c.b16 %v913, %v909
        %v1238 = vpack.c.b16 %v914, %v910
        %v1239 = vpack.c.b16 %v915, %v911
        %v1240 = vpack.c.b16 %v920, %v916
        %v1241 = vpack.c.b16 %v921, %v917
        %v1242 = vpack.c.b16 %v922, %v918
        %v1243 = vpack.c.b16 %v923, %v919
        %v1244 = vpack.c.b16 %v928, %v924
        %v1245 = vpack.c.b16 %v929, %v925
        %v1246 = vpack.c.b16 %v930, %v926
        %v1247 = vpack.c.b16 %v931, %v927
        %v1248 = vpack.c.b16 %v936, %v932
        %v1249 = vpack.c.b16 %v937, %v933
        %v1250 = vpack.c.b16 %v938, %v934
        %v1251 = vpack.c.b16 %v939, %v935
        %v1252 = vpack.c.b16 %v944, %v940
        %v1253 = vpack.c.b16 %v945, %v941
        %v1254 = vpack.c.b16 %v946, %v942
        %v1255 = vpack.c.b16 %v947, %v943
        %v1256 = vpack.c.b16 %v952, %v948
        %v1257 = vpack.c.b16 %v953, %v949
        %v1258 = vpack.c.b16 %v954, %v950
        %v1259 = vpack.c.b16 %v955, %v951
        %v1260 = vpack.c.b16 %v960, %v956
        %v1261 = vpack.c.b16 %v961, %v957
        %v1262 = vpack.c.b16 %v962, %v958
        %v1263 = vpack.c.b16 %v963, %v959
        %v1264 = vpack.c.b16 %v968, %v964
        %v1265 = vpack.c.b16 %v969, %v965
        %v1266 = vpack.c.b16 %v970, %v966
        %v1267 = vpack.c.b16 %v971, %v967
        %v1268 = vpack.c.b16 %v976, %v972
        %v1269 = vpack.c.b16 %v977, %v973
        %v1270 = vpack.c.b16 %v978, %v974
        %v1271 = vpack.c.b16 %v979, %v975
        %v1272 = vpack.c.b16 %v984, %v980
        %v1273 = vpack.c.b16 %v985, %v981
        %v1274 = vpack.c.b16 %v986, %v982
        %v1275 = vpack.c.b16 %v987, %v983
        %v1276 = vpack.c.b16 %v992, %v988
        %v1277 = vpack.c.b16 %v993, %v989
        %v1278 = vpack.c.b16 %v994, %v990
        %v1279 = vpack.c.b16 %v995, %v991
        %v1280 = vpack.c.b16 %v1000, %v996
        %v1281 = vpack.c.b16 %v1001, %v997
        %v1282 = vpack.c.b16 %v1002, %v998
        %v1283 = vpack.c.b16 %v1003, %v999
        %v1284 = vpack.c.b16 %v1008, %v1004
        %v1285 = vpack.c.b16 %v1009, %v1005
        %v1286 = vpack.c.b16 %v1010, %v1006
        %v1287 = vpack.c.b16 %v1011, %v1007
        %v1288 = vpack.c.b16 %v1016, %v1012
        %v1289 = vpack.c.b16 %v1017, %v1013
        %v1290 = vpack.c.b16 %v1018, %v1014
        %v1291 = vpack.c.b16 %v1019, %v1015
        %v1292 = vpack.c.b16 %v1024, %v1020
        %v1293 = vpack.c.b16 %v1025, %v1021
        %v1294 = vpack.c.b16 %v1026, %v1022
        %v1295 = vpack.c.b16 %v1027, %v1023
        %v1296 = vpack.c.b16 %v1032, %v1028
        %v1297 = vpack.c.b16 %v1033, %v1029
        %v1298 = vpack.c.b16 %v1034, %v1030
        %v1299 = vpack.c.b16 %v1035, %v1031
        %v1300 = vpack.c.b16 %v1040, %v1036
        %v1301 = vpack.c.b16 %v1041, %v1037
        %v1302 = vpack.c.b16 %v1042, %v1038
        %v1303 = vpack.c.b16 %v1043, %v1039
        %v1304 = vpack.c.b16 %v1048, %v1044
        %v1305 = vpack.c.b16 %v1049, %v1045
        %v1306 = vpack.c.b16 %v1050, %v1046
        %v1307 = vpack.c.b16 %v1051, %v1047
        %v1308 = vpack.c.b16 %v1056, %v1052
        %v1309 = vpack.c.b16 %v1057, %v1053
        %v1310 = vpack.c.b16 %v1058, %v1054
        %v1311 = vpack.c.b16 %v1059, %v1055
        %v1312 = vpack.c.b16 %v1064, %v1060
        %v1313 = vpack.c.b16 %v1065, %v1061
        %v1314 = vpack.c.b16 %v1066, %v1062
        %v1315 = vpack.c.b16 %v1067, %v1063
        %v1316 = vpack.c.b16 %v1072, %v1068
        %v1317 = vpack.c.b16 %v1073, %v1069
        %v1318 = vpack.c.b16 %v1074, %v1070
        %v1319 = vpack.c.b16 %v1075, %v1071
        %v1320 = vpack.c.b16 %v1080, %v1076
        %v1321 = vpack.c.b16 %v1081, %v1077
        %v1322 = vpack.c.b16 %v1082, %v1078
        %v1323 = vpack.c.b16 %v1083, %v1079
        %v1324 = vpack.c.b16 %v1088, %v1084
        %v1325 = vpack.c.b16 %v1089, %v1085
        %v1326 = vpack.c.b16 %v1090, %v1086
        %v1327 = vpack.c.b16 %v1091, %v1087
        %v1328 = vpack.c.b16 %v1096, %v1092
        %v1329 = vpack.c.b16 %v1097, %v1093
        %v1330 = vpack.c.b16 %v1098, %v1094
        %v1331 = vpack.c.b16 %v1099, %v1095
        %v1332 = vpack.c.b16 %v1104, %v1100
        %v1333 = vpack.c.b16 %v1105, %v1101
        %v1334 = vpack.c.b16 %v1106, %v1102
        %v1335 = vpack.c.b16 %v1107, %v1103
        %v1336 = vpack.c.b16 %v1112, %v1108
        %v1337 = vpack.c.b16 %v1113, %v1109
        %v1338 = vpack.c.b16 %v1114, %v1110
        %v1339 = vpack.c.b16 %v1115, %v1111
        %v1340 = vpack.c.b16 %v1120, %v1116
        %v1341 = vpack.c.b16 %v1121, %v1117
        %v1342 = vpack.c.b16 %v1122, %v1118
        %v1343 = vpack.c.b16 %v1123, %v1119
        %v1344 = vpack.c.b16 %v1128, %v1124
        %v1345 = vpack.c.b16 %v1129, %v1125
        %v1346 = vpack.c.b16 %v1130, %v1126
        %v1347 = vpack.c.b16 %v1131, %v1127
        %v1348 = vpack.c.b16 %v1136, %v1132
        %v1349 = vpack.c.b16 %v1137, %v1133
        %v1350 = vpack.c.b16 %v1138, %v1134
        %v1351 = vpack.c.b16 %v1139, %v1135
        %v1352 = vpack.c.b16 %v1144, %v1140
        %v1353 = vpack.c.b16 %v1145, %v1141
        %v1354 = vpack.c.b16 %v1146, %v1142
        %v1355 = vpack.c.b16 %v1147, %v1143
        %v1356 = vpack.c.b16 %v1152, %v1148
        %v1357 = vpack.c.b16 %v1153, %v1149
        %v1358 = vpack.c.b16 %v1154, %v1150
        %v1359 = vpack.c.b16 %v1155, %v1151
        %v1360 = vpack.c.b16 %v1160, %v1156
        %v1361 = vpack.c.b16 %v1161, %v1157
        %v1362 = vpack.c.b16 %v1162, %v1158
        %v1363 = vpack.c.b16 %v1163, %v1159
        %v1364 = vpack.c.b16 %v1168, %v1164
        %v1365 = vpack.c.b16 %v1169, %v1165
        %v1366 = vpack.c.b16 %v1170, %v1166
        %v1367 = vpack.c.b16 %v1171, %v1167
        %vm1564 = vcmask 130048
        %v1566 = vsel %vm1564, %v377, 0
        %1568 = vmatpush.bf16.msra.mxu0 %v1200
        %1569 = vmatpush.bf16.msra.mxu0 %v1196
        %1570 = vmatpush.bf16.msra.mxu0 %v1192
        %1571 = vmatpush.bf16.msra.mxu0 %v1188
        %1572 = vmatpush.bf16.msra.mxu0 %v1184
        %1573 = vmatpush.bf16.msra.mxu0 %v1180
        %1574 = vmatpush.bf16.msra.mxu0 %v1176
        %1575 = vmatpush.bf16.msra.mxu0 %v1172
        %1576 = vmatmul.bf16.gmra.mxu0 %v371
        %v1577 = vpop.f32.mrf.mxu0
        %v1578 = vadd.f32 %v576, %v1577
        %v1579 = vpop.f32.mrf.mxu0
        %v1580 = vadd.f32 %v576, %v1579
        %1581 = vdwg.mxu0
        %1582 = vmatpush.bf16.msra.mxu0 %v1232
        %1583 = vmatpush.bf16.msra.mxu0 %v1228
        %1584 = vmatpush.bf16.msra.mxu0 %v1224
        %1585 = vmatpush.bf16.msra.mxu0 %v1220
        %1586 = vmatpush.bf16.msra.mxu0 %v1216
        %1587 = vmatpush.bf16.msra.mxu0 %v1212
        %1588 = vmatpush.bf16.msra.mxu0 %v1208
        %1589 = vmatpush.bf16.msra.mxu0 %v1204
        %1590 = vmatmul.bf16.gmra.mxu0 %v372
        %v1591 = vpop.f32.mrf.mxu0
        %v1592 = vadd.f32 %v1578, %v1591
        %v1593 = vpop.f32.mrf.mxu0
        %v1594 = vadd.f32 %v1580, %v1593
        %1595 = vdwg.mxu0
        %1596 = vmatpush.bf16.msra.mxu0 %v1264
        %1597 = vmatpush.bf16.msra.mxu0 %v1260
        %1598 = vmatpush.bf16.msra.mxu0 %v1256
        %1599 = vmatpush.bf16.msra.mxu0 %v1252
        %1600 = vmatpush.bf16.msra.mxu0 %v1248
        %1601 = vmatpush.bf16.msra.mxu0 %v1244
        %1602 = vmatpush.bf16.msra.mxu0 %v1240
        %1603 = vmatpush.bf16.msra.mxu0 %v1236
        %1604 = vmatmul.bf16.gmra.mxu0 %v373
        %v1605 = vpop.f32.mrf.mxu0
        %v1606 = vadd.f32 %v1592, %v1605
        %v1607 = vpop.f32.mrf.mxu0
        %v1608 = vadd.f32 %v1594, %v1607
        %1609 = vdwg.mxu0
        %1610 = vmatpush.bf16.msra.mxu0 %v1296
        %1611 = vmatpush.bf16.msra.mxu0 %v1292
        %1612 = vmatpush.bf16.msra.mxu0 %v1288
        %1613 = vmatpush.bf16.msra.mxu0 %v1284
        %1614 = vmatpush.bf16.msra.mxu0 %v1280
        %1615 = vmatpush.bf16.msra.mxu0 %v1276
        %1616 = vmatpush.bf16.msra.mxu0 %v1272
        %1617 = vmatpush.bf16.msra.mxu0 %v1268
        %1618 = vmatmul.bf16.gmra.mxu0 %v374
        %v1619 = vpop.f32.mrf.mxu0
        %v1620 = vadd.f32 %v1606, %v1619
        %v1621 = vpop.f32.mrf.mxu0
        %v1622 = vadd.f32 %v1608, %v1621
        %1623 = vdwg.mxu0
        %1624 = vmatpush.bf16.msra.mxu0 %v1328
        %1625 = vmatpush.bf16.msra.mxu0 %v1324
        %1626 = vmatpush.bf16.msra.mxu0 %v1320
        %1627 = vmatpush.bf16.msra.mxu0 %v1316
        %1628 = vmatpush.bf16.msra.mxu0 %v1312
        %1629 = vmatpush.bf16.msra.mxu0 %v1308
        %1630 = vmatpush.bf16.msra.mxu0 %v1304
        %1631 = vmatpush.bf16.msra.mxu0 %v1300
        %1632 = vmatmul.bf16.gmra.mxu0 %v375
        %v1633 = vpop.f32.mrf.mxu0
        %v1634 = vadd.f32 %v1620, %v1633
        %v1635 = vpop.f32.mrf.mxu0
        %v1636 = vadd.f32 %v1622, %v1635
        %1637 = vdwg.mxu0
        %1638 = vmatpush.bf16.msra.mxu0 %v1360
        %1639 = vmatpush.bf16.msra.mxu0 %v1356
        %1640 = vmatpush.bf16.msra.mxu0 %v1352
        %1641 = vmatpush.bf16.msra.mxu0 %v1348
        %1642 = vmatpush.bf16.msra.mxu0 %v1344
        %1643 = vmatpush.bf16.msra.mxu0 %v1340
        %1644 = vmatpush.bf16.msra.mxu0 %v1336
        %1645 = vmatpush.bf16.msra.mxu0 %v1332
        %1646 = vmatmul.bf16.gmra.mxu0 %v376
        %v1647 = vpop.f32.mrf.mxu0
        %v1648 = vadd.f32 %v1634, %v1647
        %v1649 = vpop.f32.mrf.mxu0
        %v1650 = vadd.f32 %v1636, %v1649
        %1651 = vdwg.mxu0
        %1652 = vmatpush.bf16.msra.mxu0 0
        %1653 = vmatpush.bf16.msra.mxu0 0
        %1654 = vmatpush.bf16.msra.mxu0 0
        %1655 = vmatpush.bf16.msra.mxu0 0
        %1656 = vmatpush.bf16.msra.mxu0 0
        %1657 = vmatpush.bf16.msra.mxu0 0
        %1658 = vmatpush.bf16.msra.mxu0 0
        %1659 = vmatpush.bf16.msra.mxu0 %v1364
        %1660 = vmatmul.bf16.gmra.mxu0 %v1566
        %v1661 = vpop.f32.mrf.mxu0
        %v1662 = vadd.f32 %v1648, %v1661
        %v1663 = vpop.f32.mrf.mxu0
        %v1664 = vadd.f32 %v1650, %v1663
        %1665 = vdwg.mxu0
        %1666 = vmatpush.bf16.msra.mxu0 %v1201
        %1667 = vmatpush.bf16.msra.mxu0 %v1197
        %1668 = vmatpush.bf16.msra.mxu0 %v1193
        %1669 = vmatpush.bf16.msra.mxu0 %v1189
        %1670 = vmatpush.bf16.msra.mxu0 %v1185
        %1671 = vmatpush.bf16.msra.mxu0 %v1181
        %1672 = vmatpush.bf16.msra.mxu0 %v1177
        %1673 = vmatpush.bf16.msra.mxu0 %v1173
        %1674 = vmatmul.bf16.gmra.mxu0 %v371
        %v1675 = vpop.f32.mrf.mxu0
        %v1676 = vadd.f32 %v577, %v1675
        %v1677 = vpop.f32.mrf.mxu0
        %v1678 = vadd.f32 %v577, %v1677
        %1679 = vdwg.mxu0
        %1680 = vmatpush.bf16.msra.mxu0 %v1233
        %1681 = vmatpush.bf16.msra.mxu0 %v1229
        %1682 = vmatpush.bf16.msra.mxu0 %v1225
        %1683 = vmatpush.bf16.msra.mxu0 %v1221
        %1684 = vmatpush.bf16.msra.mxu0 %v1217
        %1685 = vmatpush.bf16.msra.mxu0 %v1213
        %1686 = vmatpush.bf16.msra.mxu0 %v1209
        %1687 = vmatpush.bf16.msra.mxu0 %v1205
        %1688 = vmatmul.bf16.gmra.mxu0 %v372
        %v1689 = vpop.f32.mrf.mxu0
        %v1690 = vadd.f32 %v1676, %v1689
        %v1691 = vpop.f32.mrf.mxu0
        %v1692 = vadd.f32 %v1678, %v1691
        %1693 = vdwg.mxu0
        %1694 = vmatpush.bf16.msra.mxu0 %v1265
        %1695 = vmatpush.bf16.msra.mxu0 %v1261
        %1696 = vmatpush.bf16.msra.mxu0 %v1257
        %1697 = vmatpush.bf16.msra.mxu0 %v1253
        %1698 = vmatpush.bf16.msra.mxu0 %v1249
        %1699 = vmatpush.bf16.msra.mxu0 %v1245
        %1700 = vmatpush.bf16.msra.mxu0 %v1241
        %1701 = vmatpush.bf16.msra.mxu0 %v1237
        %1702 = vmatmul.bf16.gmra.mxu0 %v373
        %v1703 = vpop.f32.mrf.mxu0
        %v1704 = vadd.f32 %v1690, %v1703
        %v1705 = vpop.f32.mrf.mxu0
        %v1706 = vadd.f32 %v1692, %v1705
        %1707 = vdwg.mxu0
        %1708 = vmatpush.bf16.msra.mxu0 %v1297
        %1709 = vmatpush.bf16.msra.mxu0 %v1293
        %1710 = vmatpush.bf16.msra.mxu0 %v1289
        %1711 = vmatpush.bf16.msra.mxu0 %v1285
        %1712 = vmatpush.bf16.msra.mxu0 %v1281
        %1713 = vmatpush.bf16.msra.mxu0 %v1277
        %1714 = vmatpush.bf16.msra.mxu0 %v1273
        %1715 = vmatpush.bf16.msra.mxu0 %v1269
        %1716 = vmatmul.bf16.gmra.mxu0 %v374
        %v1717 = vpop.f32.mrf.mxu0
        %v1718 = vadd.f32 %v1704, %v1717
        %v1719 = vpop.f32.mrf.mxu0
        %v1720 = vadd.f32 %v1706, %v1719
        %1721 = vdwg.mxu0
        %1722 = vmatpush.bf16.msra.mxu0 %v1329
        %1723 = vmatpush.bf16.msra.mxu0 %v1325
        %1724 = vmatpush.bf16.msra.mxu0 %v1321
        %1725 = vmatpush.bf16.msra.mxu0 %v1317
        %1726 = vmatpush.bf16.msra.mxu0 %v1313
        %1727 = vmatpush.bf16.msra.mxu0 %v1309
        %1728 = vmatpush.bf16.msra.mxu0 %v1305
        %1729 = vmatpush.bf16.msra.mxu0 %v1301
        %1730 = vmatmul.bf16.gmra.mxu0 %v375
        %v1731 = vpop.f32.mrf.mxu0
        %v1732 = vadd.f32 %v1718, %v1731
        %v1733 = vpop.f32.mrf.mxu0
        %v1734 = vadd.f32 %v1720, %v1733
        %1735 = vdwg.mxu0
        %1736 = vmatpush.bf16.msra.mxu0 %v1361
        %1737 = vmatpush.bf16.msra.mxu0 %v1357
        %1738 = vmatpush.bf16.msra.mxu0 %v1353
        %1739 = vmatpush.bf16.msra.mxu0 %v1349
        %1740 = vmatpush.bf16.msra.mxu0 %v1345
        %1741 = vmatpush.bf16.msra.mxu0 %v1341
        %1742 = vmatpush.bf16.msra.mxu0 %v1337
        %1743 = vmatpush.bf16.msra.mxu0 %v1333
        %1744 = vmatmul.bf16.gmra.mxu0 %v376
        %v1745 = vpop.f32.mrf.mxu0
        %v1746 = vadd.f32 %v1732, %v1745
        %v1747 = vpop.f32.mrf.mxu0
        %v1748 = vadd.f32 %v1734, %v1747
        %1749 = vdwg.mxu0
        %1750 = vmatpush.bf16.msra.mxu0 0
        %1751 = vmatpush.bf16.msra.mxu0 0
        %1752 = vmatpush.bf16.msra.mxu0 0
        %1753 = vmatpush.bf16.msra.mxu0 0
        %1754 = vmatpush.bf16.msra.mxu0 0
        %1755 = vmatpush.bf16.msra.mxu0 0
        %1756 = vmatpush.bf16.msra.mxu0 0
        %1757 = vmatpush.bf16.msra.mxu0 %v1365
        %1758 = vmatmul.bf16.gmra.mxu0 %v1566
        %v1759 = vpop.f32.mrf.mxu0
        %v1760 = vadd.f32 %v1746, %v1759
        %v1761 = vpop.f32.mrf.mxu0
        %v1762 = vadd.f32 %v1748, %v1761
        %1763 = vdwg.mxu0
        %1764 = vmatpush.bf16.msra.mxu0 %v1202
        %1765 = vmatpush.bf16.msra.mxu0 %v1198
        %1766 = vmatpush.bf16.msra.mxu0 %v1194
        %1767 = vmatpush.bf16.msra.mxu0 %v1190
        %1768 = vmatpush.bf16.msra.mxu0 %v1186
        %1769 = vmatpush.bf16.msra.mxu0 %v1182
        %1770 = vmatpush.bf16.msra.mxu0 %v1178
        %1771 = vmatpush.bf16.msra.mxu0 %v1174
        %1772 = vmatmul.bf16.gmra.mxu0 %v371
        %v1773 = vpop.f32.mrf.mxu0
        %v1774 = vadd.f32 %v578, %v1773
        %v1775 = vpop.f32.mrf.mxu0
        %v1776 = vadd.f32 %v578, %v1775
        %1777 = vdwg.mxu0
        %1778 = vmatpush.bf16.msra.mxu0 %v1234
        %1779 = vmatpush.bf16.msra.mxu0 %v1230
        %1780 = vmatpush.bf16.msra.mxu0 %v1226
        %1781 = vmatpush.bf16.msra.mxu0 %v1222
        %1782 = vmatpush.bf16.msra.mxu0 %v1218
        %1783 = vmatpush.bf16.msra.mxu0 %v1214
        %1784 = vmatpush.bf16.msra.mxu0 %v1210
        %1785 = vmatpush.bf16.msra.mxu0 %v1206
        %1786 = vmatmul.bf16.gmra.mxu0 %v372
        %v1787 = vpop.f32.mrf.mxu0
        %v1788 = vadd.f32 %v1774, %v1787
        %v1789 = vpop.f32.mrf.mxu0
        %v1790 = vadd.f32 %v1776, %v1789
        %1791 = vdwg.mxu0
        %1792 = vmatpush.bf16.msra.mxu0 %v1266
        %1793 = vmatpush.bf16.msra.mxu0 %v1262
        %1794 = vmatpush.bf16.msra.mxu0 %v1258
        %1795 = vmatpush.bf16.msra.mxu0 %v1254
        %1796 = vmatpush.bf16.msra.mxu0 %v1250
        %1797 = vmatpush.bf16.msra.mxu0 %v1246
        %1798 = vmatpush.bf16.msra.mxu0 %v1242
        %1799 = vmatpush.bf16.msra.mxu0 %v1238
        %1800 = vmatmul.bf16.gmra.mxu0 %v373
        %v1801 = vpop.f32.mrf.mxu0
        %v1802 = vadd.f32 %v1788, %v1801
        %v1803 = vpop.f32.mrf.mxu0
        %v1804 = vadd.f32 %v1790, %v1803
        %1805 = vdwg.mxu0
        %1806 = vmatpush.bf16.msra.mxu0 %v1298
        %1807 = vmatpush.bf16.msra.mxu0 %v1294
        %1808 = vmatpush.bf16.msra.mxu0 %v1290
        %1809 = vmatpush.bf16.msra.mxu0 %v1286
        %1810 = vmatpush.bf16.msra.mxu0 %v1282
        %1811 = vmatpush.bf16.msra.mxu0 %v1278
        %1812 = vmatpush.bf16.msra.mxu0 %v1274
        %1813 = vmatpush.bf16.msra.mxu0 %v1270
        %1814 = vmatmul.bf16.gmra.mxu0 %v374
        %v1815 = vpop.f32.mrf.mxu0
        %v1816 = vadd.f32 %v1802, %v1815
        %v1817 = vpop.f32.mrf.mxu0
        %v1818 = vadd.f32 %v1804, %v1817
        %1819 = vdwg.mxu0
        %1820 = vmatpush.bf16.msra.mxu0 %v1330
        %1821 = vmatpush.bf16.msra.mxu0 %v1326
        %1822 = vmatpush.bf16.msra.mxu0 %v1322
        %1823 = vmatpush.bf16.msra.mxu0 %v1318
        %1824 = vmatpush.bf16.msra.mxu0 %v1314
        %1825 = vmatpush.bf16.msra.mxu0 %v1310
        %1826 = vmatpush.bf16.msra.mxu0 %v1306
        %1827 = vmatpush.bf16.msra.mxu0 %v1302
        %1828 = vmatmul.bf16.gmra.mxu0 %v375
        %v1829 = vpop.f32.mrf.mxu0
        %v1830 = vadd.f32 %v1816, %v1829
        %v1831 = vpop.f32.mrf.mxu0
        %v1832 = vadd.f32 %v1818, %v1831
        %1833 = vdwg.mxu0
        %1834 = vmatpush.bf16.msra.mxu0 %v1362
        %1835 = vmatpush.bf16.msra.mxu0 %v1358
        %1836 = vmatpush.bf16.msra.mxu0 %v1354
        %1837 = vmatpush.bf16.msra.mxu0 %v1350
        %1838 = vmatpush.bf16.msra.mxu0 %v1346
        %1839 = vmatpush.bf16.msra.mxu0 %v1342
        %1840 = vmatpush.bf16.msra.mxu0 %v1338
        %1841 = vmatpush.bf16.msra.mxu0 %v1334
        %1842 = vmatmul.bf16.gmra.mxu0 %v376
        %v1843 = vpop.f32.mrf.mxu0
        %v1844 = vadd.f32 %v1830, %v1843
        %v1845 = vpop.f32.mrf.mxu0
        %v1846 = vadd.f32 %v1832, %v1845
        %1847 = vdwg.mxu0
        %1848 = vmatpush.bf16.msra.mxu0 0
        %1849 = vmatpush.bf16.msra.mxu0 0
        %1850 = vmatpush.bf16.msra.mxu0 0
        %1851 = vmatpush.bf16.msra.mxu0 0
        %1852 = vmatpush.bf16.msra.mxu0 0
        %1853 = vmatpush.bf16.msra.mxu0 0
        %1854 = vmatpush.bf16.msra.mxu0 0
        %1855 = vmatpush.bf16.msra.mxu0 %v1366
        %1856 = vmatmul.bf16.gmra.mxu0 %v1566
        %v1857 = vpop.f32.mrf.mxu0
        %v1858 = vadd.f32 %v1844, %v1857
        %v1859 = vpop.f32.mrf.mxu0
        %v1860 = vadd.f32 %v1846, %v1859
        %1861 = vdwg.mxu0
        %1862 = vmatpush.bf16.msra.mxu0 %v1203
        %1863 = vmatpush.bf16.msra.mxu0 %v1199
        %1864 = vmatpush.bf16.msra.mxu0 %v1195
        %1865 = vmatpush.bf16.msra.mxu0 %v1191
        %1866 = vmatpush.bf16.msra.mxu0 %v1187
        %1867 = vmatpush.bf16.msra.mxu0 %v1183
        %1868 = vmatpush.bf16.msra.mxu0 %v1179
        %1869 = vmatpush.bf16.msra.mxu0 %v1175
        %1870 = vmatmul.bf16.gmra.mxu0 %v371
        %v1871 = vpop.f32.mrf.mxu0
        %v1872 = vadd.f32 %v579, %v1871
        %v1873 = vpop.f32.mrf.mxu0
        %v1874 = vadd.f32 %v579, %v1873
        %1875 = vdwg.mxu0
        %1876 = vmatpush.bf16.msra.mxu0 %v1235
        %1877 = vmatpush.bf16.msra.mxu0 %v1231
        %1878 = vmatpush.bf16.msra.mxu0 %v1227
        %1879 = vmatpush.bf16.msra.mxu0 %v1223
        %1880 = vmatpush.bf16.msra.mxu0 %v1219
        %1881 = vmatpush.bf16.msra.mxu0 %v1215
        %1882 = vmatpush.bf16.msra.mxu0 %v1211
        %1883 = vmatpush.bf16.msra.mxu0 %v1207
        %1884 = vmatmul.bf16.gmra.mxu0 %v372
        %v1885 = vpop.f32.mrf.mxu0
        %v1886 = vadd.f32 %v1872, %v1885
        %v1887 = vpop.f32.mrf.mxu0
        %v1888 = vadd.f32 %v1874, %v1887
        %1889 = vdwg.mxu0
        %1890 = vmatpush.bf16.msra.mxu0 %v1267
        %1891 = vmatpush.bf16.msra.mxu0 %v1263
        %1892 = vmatpush.bf16.msra.mxu0 %v1259
        %1893 = vmatpush.bf16.msra.mxu0 %v1255
        %1894 = vmatpush.bf16.msra.mxu0 %v1251
        %1895 = vmatpush.bf16.msra.mxu0 %v1247
        %1896 = vmatpush.bf16.msra.mxu0 %v1243
        %1897 = vmatpush.bf16.msra.mxu0 %v1239
        %1898 = vmatmul.bf16.gmra.mxu0 %v373
        %v1899 = vpop.f32.mrf.mxu0
        %v1900 = vadd.f32 %v1886, %v1899
        %v1901 = vpop.f32.mrf.mxu0
        %v1902 = vadd.f32 %v1888, %v1901
        %1903 = vdwg.mxu0
        %1904 = vmatpush.bf16.msra.mxu0 %v1299
        %1905 = vmatpush.bf16.msra.mxu0 %v1295
        %1906 = vmatpush.bf16.msra.mxu0 %v1291
        %1907 = vmatpush.bf16.msra.mxu0 %v1287
        %1908 = vmatpush.bf16.msra.mxu0 %v1283
        %1909 = vmatpush.bf16.msra.mxu0 %v1279
        %1910 = vmatpush.bf16.msra.mxu0 %v1275
        %1911 = vmatpush.bf16.msra.mxu0 %v1271
        %1912 = vmatmul.bf16.gmra.mxu0 %v374
        %v1913 = vpop.f32.mrf.mxu0
        %v1914 = vadd.f32 %v1900, %v1913
        %v1915 = vpop.f32.mrf.mxu0
        %v1916 = vadd.f32 %v1902, %v1915
        %1917 = vdwg.mxu0
        %1918 = vmatpush.bf16.msra.mxu0 %v1331
        %1919 = vmatpush.bf16.msra.mxu0 %v1327
        %1920 = vmatpush.bf16.msra.mxu0 %v1323
        %1921 = vmatpush.bf16.msra.mxu0 %v1319
        %1922 = vmatpush.bf16.msra.mxu0 %v1315
        %1923 = vmatpush.bf16.msra.mxu0 %v1311
        %1924 = vmatpush.bf16.msra.mxu0 %v1307
        %1925 = vmatpush.bf16.msra.mxu0 %v1303
        %1926 = vmatmul.bf16.gmra.mxu0 %v375
        %v1927 = vpop.f32.mrf.mxu0
        %v1928 = vadd.f32 %v1914, %v1927
        %v1929 = vpop.f32.mrf.mxu0
        %v1930 = vadd.f32 %v1916, %v1929
        %1931 = vdwg.mxu0
        %1932 = vmatpush.bf16.msra.mxu0 %v1363
        %1933 = vmatpush.bf16.msra.mxu0 %v1359
        %1934 = vmatpush.bf16.msra.mxu0 %v1355
        %1935 = vmatpush.bf16.msra.mxu0 %v1351
        %1936 = vmatpush.bf16.msra.mxu0 %v1347
        %1937 = vmatpush.bf16.msra.mxu0 %v1343
        %1938 = vmatpush.bf16.msra.mxu0 %v1339
        %1939 = vmatpush.bf16.msra.mxu0 %v1335
        %1940 = vmatmul.bf16.gmra.mxu0 %v376
        %v1941 = vpop.f32.mrf.mxu0
        %v1942 = vadd.f32 %v1928, %v1941
        %v1943 = vpop.f32.mrf.mxu0
        %v1944 = vadd.f32 %v1930, %v1943
        %1945 = vdwg.mxu0
        %1946 = vmatpush.bf16.msra.mxu0 0
        %1947 = vmatpush.bf16.msra.mxu0 0
        %1948 = vmatpush.bf16.msra.mxu0 0
        %1949 = vmatpush.bf16.msra.mxu0 0
        %1950 = vmatpush.bf16.msra.mxu0 0
        %1951 = vmatpush.bf16.msra.mxu0 0
        %1952 = vmatpush.bf16.msra.mxu0 0
        %1953 = vmatpush.bf16.msra.mxu0 %v1367
        %1954 = vmatmul.bf16.gmra.mxu0 %v1566
        %v1955 = vpop.f32.mrf.mxu0
        %v1956 = vadd.f32 %v1942, %v1955
        %v1957 = vpop.f32.mrf.mxu0
        %v1958 = vadd.f32 %v1944, %v1957
        %1959 = vdwg.mxu0
        %v1960 = vmax.f32 %v1662, 0.0
        %v1961 = vmax.f32 %v1760, 0.0
        %v1962 = vmax.f32 %v1858, 0.0
        %v1963 = vmax.f32 %v1956, 0.0
        %v1964 = vmax.f32 %v1664, 0.0
        %v1965 = vmax.f32 %v1762, 0.0
        %v1966 = vmax.f32 %v1860, 0.0
        %v1967 = vmax.f32 %v1958, 0.0
        %v1968 = vpack.c.bf16 %v1964, %v1960
        %v1969 = vpack.c.bf16 %v1965, %v1961
        %v1970 = vpack.c.bf16 %v1966, %v1962
        %v1971 = vpack.c.bf16 %v1967, %v1963
        %v1972 = vld [vmem:[%s3] sm:$0xff]
        %v1973 = vld [vmem:[%s3 + $0x8] sm:$0xff]
        %v1974 = vld [vmem:[%s3 + $0x10] sm:$0xff]
        %v1975 = vld [vmem:[%s3 + $0x18] sm:$0xff]
        %v1976 = vld [vmem:[%s3 + $0x20] sm:$0xff]
        %v1977 = vld [vmem:[%s3 + $0x28] sm:$0xff]
        %v1978 = vld [vmem:[%s3 + $0x30] sm:$0xff]
        %v1979 = vld [vmem:[%s3 + $0x38] sm:$0xff]
        %v1980 = vld [vmem:[%s3 + $0x40] sm:$0xff]
        %v1981 = vld [vmem:[%s3 + $0x48] sm:$0xff]
        %v1982 = vld [vmem:[%s3 + $0x50] sm:$0xff]
        %v1983 = vld [vmem:[%s3 + $0x58] sm:$0xff]
        %v1984 = vld [vmem:[%s3 + $0x60] sm:$0xff]
        %v1985 = vld [vmem:[%s3 + $0x68] sm:$0xff]
        %v1986 = vld [vmem:[%s3 + $0x70] sm:$0xff]
        %v1987 = vld [vmem:[%s3 + $0x78] sm:$0xff]
        %v1988 = vld [vmem:[%s3 + $0x80] sm:$0xff]
        %v1989 = vld [vmem:[%s3 + $0x88] sm:$0xff]
        %v1990 = vld [vmem:[%s3 + $0x90] sm:$0xff]
        %v1991 = vld [vmem:[%s3 + $0x98] sm:$0xff]
        %v1992 = vld [vmem:[%s3 + $0xa0] sm:$0xff]
        %v1993 = vld [vmem:[%s3 + $0xa8] sm:$0xff]
        %v1994 = vld [vmem:[%s3 + $0xb0] sm:$0xff]
        %v1995 = vld [vmem:[%s3 + $0xb8] sm:$0xff]
        %v1996 = vld [vmem:[%s3 + $0xc0] sm:$0xff]
        %v1997 = vld [vmem:[%s3 + $0xc8] sm:$0xff]
        %v1998 = vld [vmem:[%s3 + $0xd0] sm:$0xff]
        %v1999 = vld [vmem:[%s3 + $0xd8] sm:$0xff]
        %v2000 = vld [vmem:[%s3 + $0xe0] sm:$0xff]
        %v2001 = vld [vmem:[%s3 + $0xe8] sm:$0xff]
        %v2002 = vld [vmem:[%s3 + $0xf0] sm:$0xff]
        %v2003 = vld [vmem:[%s3 + $0xf8] sm:$0xff]
        %v2004 = vld [vmem:[%s3 + $0x100] sm:$0xff]
        %v2005 = vld [vmem:[%s3 + $0x108] sm:$0xff]
        %v2006 = vld [vmem:[%s3 + $0x110] sm:$0xff]
        %v2007 = vld [vmem:[%s3 + $0x118] sm:$0xff]
        %v2008 = vld [vmem:[%s3 + $0x120] sm:$0xff]
        %v2009 = vld [vmem:[%s3 + $0x128] sm:$0xff]
        %v2010 = vld [vmem:[%s3 + $0x130] sm:$0xff]
        %v2011 = vld [vmem:[%s3 + $0x138] sm:$0xff]
        %v2012 = vld [vmem:[%s3 + $0x140] sm:$0xff]
        %v2013 = vld [vmem:[%s3 + $0x148] sm:$0xff]
        %v2014 = vld [vmem:[%s3 + $0x150] sm:$0xff]
        %v2015 = vld [vmem:[%s3 + $0x158] sm:$0xff]
        %v2016 = vld [vmem:[%s3 + $0x160] sm:$0xff]
        %v2017 = vld [vmem:[%s3 + $0x168] sm:$0xff]
        %v2018 = vld [vmem:[%s3 + $0x170] sm:$0xff]
        %v2019 = vld [vmem:[%s3 + $0x178] sm:$0xff]
        %v2020 = vld [vmem:[%s3 + $0x180] sm:$0xff]
        %v2021 = vld [vmem:[%s3 + $0x188] sm:$0xff]
        %v2022 = vld [vmem:[%s3 + $0x190] sm:$0xff]
        %v2023 = vld [vmem:[%s3 + $0x198] sm:$0xff]
        %v2024 = vld [vmem:[%s3 + $0x1a0] sm:$0xff]
        %v2025 = vld [vmem:[%s3 + $0x1a8] sm:$0xff]
        %v2026 = vld [vmem:[%s3 + $0x1b0] sm:$0xff]
        %v2027 = vld [vmem:[%s3 + $0x1b8] sm:$0xff]
        %v2028 = vld [vmem:[%s3 + $0x1c0] sm:$0xff]
        %v2029 = vld [vmem:[%s3 + $0x1c8] sm:$0xff]
        %v2030 = vld [vmem:[%s3 + $0x1d0] sm:$0xff]
        %v2031 = vld [vmem:[%s3 + $0x1d8] sm:$0xff]
        %v2032 = vld [vmem:[%s3 + $0x1e0] sm:$0xff]
        %v2033 = vld [vmem:[%s3 + $0x1e8] sm:$0xff]
        %v2034 = vld [vmem:[%s3 + $0x1f0] sm:$0xff]
        %v2035 = vld [vmem:[%s3 + $0x1f8] sm:$0xff]
        %v2036 = vld [vmem:[%s4] sm:$0x3]
        %v2038 = vperm.slane %v2036, 0
        %v2039 = vperm.slane %v2036, 1
        %v2106 = vunpack.c.l.b16 %v1972
        %v2107 = vunpack.c.h.b16 %v1972
        %v2108 = vunpack.c.l.b16 %v1973
        %v2109 = vunpack.c.h.b16 %v1973
        %v2110 = vunpack.c.l.b16 %v1974
        %v2111 = vunpack.c.h.b16 %v1974
        %v2112 = vunpack.c.l.b16 %v1975
        %v2113 = vunpack.c.h.b16 %v1975
        %v2114 = vunpack.c.l.b16 %v1976
        %v2115 = vunpack.c.h.b16 %v1976
        %v2116 = vunpack.c.l.b16 %v1977
        %v2117 = vunpack.c.h.b16 %v1977
        %v2118 = vunpack.c.l.b16 %v1978
        %v2119 = vunpack.c.h.b16 %v1978
        %v2120 = vunpack.c.l.b16 %v1979
        %v2121 = vunpack.c.h.b16 %v1979
        %v2122 = vunpack.c.l.b16 %v1980
        %v2123 = vunpack.c.h.b16 %v1980
        %v2124 = vunpack.c.l.b16 %v1981
        %v2125 = vunpack.c.h.b16 %v1981
        %v2126 = vunpack.c.l.b16 %v1982
        %v2127 = vunpack.c.h.b16 %v1982
        %v2128 = vunpack.c.l.b16 %v1983
        %v2129 = vunpack.c.h.b16 %v1983
        %v2130 = vunpack.c.l.b16 %v1984
        %v2131 = vunpack.c.h.b16 %v1984
        %v2132 = vunpack.c.l.b16 %v1985
        %v2133 = vunpack.c.h.b16 %v1985
        %v2134 = vunpack.c.l.b16 %v1986
        %v2135 = vunpack.c.h.b16 %v1986
        %v2136 = vunpack.c.l.b16 %v1987
        %v2137 = vunpack.c.h.b16 %v1987
        %v2138 = vunpack.c.l.b16 %v1988
        %v2139 = vunpack.c.h.b16 %v1988
        %v2140 = vunpack.c.l.b16 %v1989
        %v2141 = vunpack.c.h.b16 %v1989
        %v2142 = vunpack.c.l.b16 %v1990
        %v2143 = vunpack.c.h.b16 %v1990
        %v2144 = vunpack.c.l.b16 %v1991
        %v2145 = vunpack.c.h.b16 %v1991
        %v2146 = vunpack.c.l.b16 %v1992
        %v2147 = vunpack.c.h.b16 %v1992
        %v2148 = vunpack.c.l.b16 %v1993
        %v2149 = vunpack.c.h.b16 %v1993
        %v2150 = vunpack.c.l.b16 %v1994
        %v2151 = vunpack.c.h.b16 %v1994
        %v2152 = vunpack.c.l.b16 %v1995
        %v2153 = vunpack.c.h.b16 %v1995
        %v2154 = vunpack.c.l.b16 %v1996
        %v2155 = vunpack.c.h.b16 %v1996
        %v2156 = vunpack.c.l.b16 %v1997
        %v2157 = vunpack.c.h.b16 %v1997
        %v2158 = vunpack.c.l.b16 %v1998
        %v2159 = vunpack.c.h.b16 %v1998
        %v2160 = vunpack.c.l.b16 %v1999
        %v2161 = vunpack.c.h.b16 %v1999
        %v2162 = vunpack.c.l.b16 %v2000
        %v2163 = vunpack.c.h.b16 %v2000
        %v2164 = vunpack.c.l.b16 %v2001
        %v2165 = vunpack.c.h.b16 %v2001
        %v2166 = vunpack.c.l.b16 %v2002
        %v2167 = vunpack.c.h.b16 %v2002
        %v2168 = vunpack.c.l.b16 %v2003
        %v2169 = vunpack.c.h.b16 %v2003
        %v2170 = vunpack.c.l.b16 %v2004
        %v2171 = vunpack.c.h.b16 %v2004
        %v2172 = vunpack.c.l.b16 %v2005
        %v2173 = vunpack.c.h.b16 %v2005
        %v2174 = vunpack.c.l.b16 %v2006
        %v2175 = vunpack.c.h.b16 %v2006
        %v2176 = vunpack.c.l.b16 %v2007
        %v2177 = vunpack.c.h.b16 %v2007
        %v2178 = vunpack.c.l.b16 %v2008
        %v2179 = vunpack.c.h.b16 %v2008
        %v2180 = vunpack.c.l.b16 %v2009
        %v2181 = vunpack.c.h.b16 %v2009
        %v2182 = vunpack.c.l.b16 %v2010
        %v2183 = vunpack.c.h.b16 %v2010
        %v2184 = vunpack.c.l.b16 %v2011
        %v2185 = vunpack.c.h.b16 %v2011
        %v2186 = vunpack.c.l.b16 %v2012
        %v2187 = vunpack.c.h.b16 %v2012
        %v2188 = vunpack.c.l.b16 %v2013
        %v2189 = vunpack.c.h.b16 %v2013
        %v2190 = vunpack.c.l.b16 %v2014
        %v2191 = vunpack.c.h.b16 %v2014
        %v2192 = vunpack.c.l.b16 %v2015
        %v2193 = vunpack.c.h.b16 %v2015
        %v2194 = vunpack.c.l.b16 %v2016
        %v2195 = vunpack.c.h.b16 %v2016
        %v2196 = vunpack.c.l.b16 %v2017
        %v2197 = vunpack.c.h.b16 %v2017
        %v2198 = vunpack.c.l.b16 %v2018
        %v2199 = vunpack.c.h.b16 %v2018
        %v2200 = vunpack.c.l.b16 %v2019
        %v2201 = vunpack.c.h.b16 %v2019
        %v2202 = vunpack.c.l.b16 %v2020
        %v2203 = vunpack.c.h.b16 %v2020
        %v2204 = vunpack.c.l.b16 %v2021
        %v2205 = vunpack.c.h.b16 %v2021
        %v2206 = vunpack.c.l.b16 %v2022
        %v2207 = vunpack.c.h.b16 %v2022
        %v2208 = vunpack.c.l.b16 %v2023
        %v2209 = vunpack.c.h.b16 %v2023
        %v2210 = vunpack.c.l.b16 %v2024
        %v2211 = vunpack.c.h.b16 %v2024
        %v2212 = vunpack.c.l.b16 %v2025
        %v2213 = vunpack.c.h.b16 %v2025
        %v2214 = vunpack.c.l.b16 %v2026
        %v2215 = vunpack.c.h.b16 %v2026
        %v2216 = vunpack.c.l.b16 %v2027
        %v2217 = vunpack.c.h.b16 %v2027
        %v2218 = vunpack.c.l.b16 %v2028
        %v2219 = vunpack.c.h.b16 %v2028
        %v2220 = vunpack.c.l.b16 %v2029
        %v2221 = vunpack.c.h.b16 %v2029
        %v2222 = vunpack.c.l.b16 %v2030
        %v2223 = vunpack.c.h.b16 %v2030
        %v2224 = vunpack.c.l.b16 %v2031
        %v2225 = vunpack.c.h.b16 %v2031
        %v2226 = vunpack.c.l.b16 %v2032
        %v2227 = vunpack.c.h.b16 %v2032
        %v2228 = vunpack.c.l.b16 %v2033
        %v2229 = vunpack.c.h.b16 %v2033
        %v2230 = vunpack.c.l.b16 %v2034
        %v2231 = vunpack.c.h.b16 %v2034
        %v2232 = vunpack.c.l.b16 %v2035
        %v2233 = vunpack.c.h.b16 %v2035
        %v2234 = vpack.c.b16 %v2108, %v2106
        %v2235 = vpack.c.b16 %v2109, %v2107
        %v2236 = vpack.c.b16 %v2112, %v2110
        %v2237 = vpack.c.b16 %v2113, %v2111
        %v2238 = vpack.c.b16 %v2116, %v2114
        %v2239 = vpack.c.b16 %v2117, %v2115
        %v2240 = vpack.c.b16 %v2120, %v2118
        %v2241 = vpack.c.b16 %v2121, %v2119
        %v2242 = vpack.c.b16 %v2124, %v2122
        %v2243 = vpack.c.b16 %v2125, %v2123
        %v2244 = vpack.c.b16 %v2128, %v2126
        %v2245 = vpack.c.b16 %v2129, %v2127
        %v2246 = vpack.c.b16 %v2132, %v2130
        %v2247 = vpack.c.b16 %v2133, %v2131
        %v2248 = vpack.c.b16 %v2136, %v2134
        %v2249 = vpack.c.b16 %v2137, %v2135
        %v2250 = vpack.c.b16 %v2140, %v2138
        %v2251 = vpack.c.b16 %v2141, %v2139
        %v2252 = vpack.c.b16 %v2144, %v2142
        %v2253 = vpack.c.b16 %v2145, %v2143
        %v2254 = vpack.c.b16 %v2148, %v2146
        %v2255 = vpack.c.b16 %v2149, %v2147
        %v2256 = vpack.c.b16 %v2152, %v2150
        %v2257 = vpack.c.b16 %v2153, %v2151
        %v2258 = vpack.c.b16 %v2156, %v2154
        %v2259 = vpack.c.b16 %v2157, %v2155
        %v2260 = vpack.c.b16 %v2160, %v2158
        %v2261 = vpack.c.b16 %v2161, %v2159
        %v2262 = vpack.c.b16 %v2164, %v2162
        %v2263 = vpack.c.b16 %v2165, %v2163
        %v2264 = vpack.c.b16 %v2168, %v2166
        %v2265 = vpack.c.b16 %v2169, %v2167
        %v2266 = vpack.c.b16 %v2172, %v2170
        %v2267 = vpack.c.b16 %v2173, %v2171
        %v2268 = vpack.c.b16 %v2176, %v2174
        %v2269 = vpack.c.b16 %v2177, %v2175
        %v2270 = vpack.c.b16 %v2180, %v2178
        %v2271 = vpack.c.b16 %v2181, %v2179
        %v2272 = vpack.c.b16 %v2184, %v2182
        %v2273 = vpack.c.b16 %v2185, %v2183
        %v2274 = vpack.c.b16 %v2188, %v2186
        %v2275 = vpack.c.b16 %v2189, %v2187
        %v2276 = vpack.c.b16 %v2192, %v2190
        %v2277 = vpack.c.b16 %v2193, %v2191
        %v2278 = vpack.c.b16 %v2196, %v2194
        %v2279 = vpack.c.b16 %v2197, %v2195
        %v2280 = vpack.c.b16 %v2200, %v2198
        %v2281 = vpack.c.b16 %v2201, %v2199
        %v2282 = vpack.c.b16 %v2204, %v2202
        %v2283 = vpack.c.b16 %v2205, %v2203
        %v2284 = vpack.c.b16 %v2208, %v2206
        %v2285 = vpack.c.b16 %v2209, %v2207
        %v2286 = vpack.c.b16 %v2212, %v2210
        %v2287 = vpack.c.b16 %v2213, %v2211
        %v2288 = vpack.c.b16 %v2216, %v2214
        %v2289 = vpack.c.b16 %v2217, %v2215
        %v2290 = vpack.c.b16 %v2220, %v2218
        %v2291 = vpack.c.b16 %v2221, %v2219
        %v2292 = vpack.c.b16 %v2224, %v2222
        %v2293 = vpack.c.b16 %v2225, %v2223
        %v2294 = vpack.c.b16 %v2228, %v2226
        %v2295 = vpack.c.b16 %v2229, %v2227
        %v2296 = vpack.c.b16 %v2232, %v2230
        %v2297 = vpack.c.b16 %v2233, %v2231
        %2362 = vmatpush.bf16.msra.mxu0 %v2248
        %2363 = vmatpush.bf16.msra.mxu0 %v2246
        %2364 = vmatpush.bf16.msra.mxu0 %v2244
        %2365 = vmatpush.bf16.msra.mxu0 %v2242
        %2366 = vmatpush.bf16.msra.mxu0 %v2240
        %2367 = vmatpush.bf16.msra.mxu0 %v2238
        %2368 = vmatpush.bf16.msra.mxu0 %v2236
        %2369 = vmatpush.bf16.msra.mxu0 %v2234
        %2370 = vmatmul.bf16.gmra.mxu0 %v1968
        %v2371 = vpop.f32.mrf.mxu0
        %v2372 = vadd.f32 %v2038, %v2371
        %v2373 = vpop.f32.mrf.mxu0
        %v2374 = vadd.f32 %v2038, %v2373
        %2375 = vdwg.mxu0
        %2376 = vmatpush.bf16.msra.mxu0 %v2264
        %2377 = vmatpush.bf16.msra.mxu0 %v2262
        %2378 = vmatpush.bf16.msra.mxu0 %v2260
        %2379 = vmatpush.bf16.msra.mxu0 %v2258
        %2380 = vmatpush.bf16.msra.mxu0 %v2256
        %2381 = vmatpush.bf16.msra.mxu0 %v2254
        %2382 = vmatpush.bf16.msra.mxu0 %v2252
        %2383 = vmatpush.bf16.msra.mxu0 %v2250
        %2384 = vmatmul.bf16.gmra.mxu0 %v1969
        %v2385 = vpop.f32.mrf.mxu0
        %v2386 = vadd.f32 %v2372, %v2385
        %v2387 = vpop.f32.mrf.mxu0
        %v2388 = vadd.f32 %v2374, %v2387
        %2389 = vdwg.mxu0
        %2390 = vmatpush.bf16.msra.mxu0 %v2280
        %2391 = vmatpush.bf16.msra.mxu0 %v2278
        %2392 = vmatpush.bf16.msra.mxu0 %v2276
        %2393 = vmatpush.bf16.msra.mxu0 %v2274
        %2394 = vmatpush.bf16.msra.mxu0 %v2272
        %2395 = vmatpush.bf16.msra.mxu0 %v2270
        %2396 = vmatpush.bf16.msra.mxu0 %v2268
        %2397 = vmatpush.bf16.msra.mxu0 %v2266
        %2398 = vmatmul.bf16.gmra.mxu0 %v1970
        %v2399 = vpop.f32.mrf.mxu0
        %v2400 = vadd.f32 %v2386, %v2399
        %v2401 = vpop.f32.mrf.mxu0
        %v2402 = vadd.f32 %v2388, %v2401
        %2403 = vdwg.mxu0
        %2404 = vmatpush.bf16.msra.mxu0 %v2296
        %2405 = vmatpush.bf16.msra.mxu0 %v2294
        %2406 = vmatpush.bf16.msra.mxu0 %v2292
        %2407 = vmatpush.bf16.msra.mxu0 %v2290
        %2408 = vmatpush.bf16.msra.mxu0 %v2288
        %2409 = vmatpush.bf16.msra.mxu0 %v2286
        %2410 = vmatpush.bf16.msra.mxu0 %v2284
        %2411 = vmatpush.bf16.msra.mxu0 %v2282
        %2412 = vmatmul.bf16.gmra.mxu0 %v1971
        %v2413 = vpop.f32.mrf.mxu0
        %v2414 = vadd.f32 %v2400, %v2413
        %v2415 = vpop.f32.mrf.mxu0
        %v2416 = vadd.f32 %v2402, %v2415
        %2417 = vdwg.mxu0
        %2418 = vmatpush.bf16.msra.mxu0 %v2249
        %2419 = vmatpush.bf16.msra.mxu0 %v2247
        %2420 = vmatpush.bf16.msra.mxu0 %v2245
        %2421 = vmatpush.bf16.msra.mxu0 %v2243
        %2422 = vmatpush.bf16.msra.mxu0 %v2241
        %2423 = vmatpush.bf16.msra.mxu0 %v2239
        %2424 = vmatpush.bf16.msra.mxu0 %v2237
        %2425 = vmatpush.bf16.msra.mxu0 %v2235
        %2426 = vmatmul.bf16.gmra.mxu0 %v1968
        %v2427 = vpop.f32.mrf.mxu0
        %v2428 = vadd.f32 %v2039, %v2427
        %v2429 = vpop.f32.mrf.mxu0
        %v2430 = vadd.f32 %v2039, %v2429
        %2431 = vdwg.mxu0
        %2432 = vmatpush.bf16.msra.mxu0 %v2265
        %2433 = vmatpush.bf16.msra.mxu0 %v2263
        %2434 = vmatpush.bf16.msra.mxu0 %v2261
        %2435 = vmatpush.bf16.msra.mxu0 %v2259
        %2436 = vmatpush.bf16.msra.mxu0 %v2257
        %2437 = vmatpush.bf16.msra.mxu0 %v2255
        %2438 = vmatpush.bf16.msra.mxu0 %v2253
        %2439 = vmatpush.bf16.msra.mxu0 %v2251
        %2440 = vmatmul.bf16.gmra.mxu0 %v1969
        %v2441 = vpop.f32.mrf.mxu0
        %v2442 = vadd.f32 %v2428, %v2441
        %v2443 = vpop.f32.mrf.mxu0
        %v2444 = vadd.f32 %v2430, %v2443
        %2445 = vdwg.mxu0
        %2446 = vmatpush.bf16.msra.mxu0 %v2281
        %2447 = vmatpush.bf16.msra.mxu0 %v2279
        %2448 = vmatpush.bf16.msra.mxu0 %v2277
        %2449 = vmatpush.bf16.msra.mxu0 %v2275
        %2450 = vmatpush.bf16.msra.mxu0 %v2273
        %2451 = vmatpush.bf16.msra.mxu0 %v2271
        %2452 = vmatpush.bf16.msra.mxu0 %v2269
        %2453 = vmatpush.bf16.msra.mxu0 %v2267
        %2454 = vmatmul.bf16.gmra.mxu0 %v1970
        %v2455 = vpop.f32.mrf.mxu0
        %v2456 = vadd.f32 %v2442, %v2455
        %v2457 = vpop.f32.mrf.mxu0
        %v2458 = vadd.f32 %v2444, %v2457
        %2459 = vdwg.mxu0
        %2460 = vmatpush.bf16.msra.mxu0 %v2297
        %2461 = vmatpush.bf16.msra.mxu0 %v2295
        %2462 = vmatpush.bf16.msra.mxu0 %v2293
        %2463 = vmatpush.bf16.msra.mxu0 %v2291
        %2464 = vmatpush.bf16.msra.mxu0 %v2289
        %2465 = vmatpush.bf16.msra.mxu0 %v2287
        %2466 = vmatpush.bf16.msra.mxu0 %v2285
        %2467 = vmatpush.bf16.msra.mxu0 %v2283
        %2468 = vmatmul.bf16.gmra.mxu0 %v1971
        %v2469 = vpop.f32.mrf.mxu0
        %v2470 = vadd.f32 %v2456, %v2469
        %v2471 = vpop.f32.mrf.mxu0
        %v2472 = vadd.f32 %v2458, %v2471
        %2473 = vdwg.mxu0
        %v2474 = vmax.f32 %v2414, 0.0
        %v2475 = vmax.f32 %v2470, 0.0
        %v2476 = vmax.f32 %v2416, 0.0
        %v2477 = vmax.f32 %v2472, 0.0
        %v2478 = vpack.c.bf16 %v2476, %v2474
        %v2479 = vpack.c.bf16 %v2477, %v2475
        %v2480 = vld [vmem:[%s5] sm:$0xf]
        %v2481 = vld [vmem:[%s5 + $0x4] sm:$0xf]
        %v2482 = vld [vmem:[%s5 + $0x8] sm:$0xf]
        %v2483 = vld [vmem:[%s5 + $0xc] sm:$0xf]
        %v2484 = vld [vmem:[%s5 + $0x10] sm:$0xf]
        %v2485 = vld [vmem:[%s5 + $0x14] sm:$0xf]
        %v2486 = vld [vmem:[%s5 + $0x18] sm:$0xf]
        %v2487 = vld [vmem:[%s5 + $0x1c] sm:$0xf]
        %v2488 = vld [vmem:[%s5 + $0x20] sm:$0xf]
        %v2489 = vld [vmem:[%s5 + $0x24] sm:$0xf]
        %v2490 = vld [vmem:[%s5 + $0x28] sm:$0xf]
        %v2491 = vld [vmem:[%s5 + $0x2c] sm:$0xf]
        %v2492 = vld [vmem:[%s5 + $0x30] sm:$0xf]
        %v2493 = vld [vmem:[%s5 + $0x34] sm:$0xf]
        %v2494 = vld [vmem:[%s5 + $0x38] sm:$0xf]
        %v2495 = vld [vmem:[%s5 + $0x3c] sm:$0xf]
        %v2496 = vld [vmem:[%s5 + $0x40] sm:$0xf]
        %v2497 = vld [vmem:[%s5 + $0x44] sm:$0xf]
        %v2498 = vld [vmem:[%s5 + $0x48] sm:$0xf]
        %v2499 = vld [vmem:[%s5 + $0x4c] sm:$0xf]
        %v2500 = vld [vmem:[%s5 + $0x50] sm:$0xf]
        %v2501 = vld [vmem:[%s5 + $0x54] sm:$0xf]
        %v2502 = vld [vmem:[%s5 + $0x58] sm:$0xf]
        %v2503 = vld [vmem:[%s5 + $0x5c] sm:$0xf]
        %v2504 = vld [vmem:[%s5 + $0x60] sm:$0xf]
        %v2505 = vld [vmem:[%s5 + $0x64] sm:$0xf]
        %v2506 = vld [vmem:[%s5 + $0x68] sm:$0xf]
        %v2507 = vld [vmem:[%s5 + $0x6c] sm:$0xf]
        %v2508 = vld [vmem:[%s5 + $0x70] sm:$0xf]
        %v2509 = vld [vmem:[%s5 + $0x74] sm:$0xf]
        %v2510 = vld [vmem:[%s5 + $0x78] sm:$0xf]
        %v2511 = vld [vmem:[%s5 + $0x7c] sm:$0xf]
        %v2512 = vld [vmem:[%s6] sm:$0x1]
        %v2514 = vperm.slane %v2512, 0
        %v2548 = vunpack.c.l.b16 %v2480
        %v2549 = vunpack.c.l.b16 %v2481
        %v2550 = vunpack.c.l.b16 %v2482
        %v2551 = vunpack.c.l.b16 %v2483
        %v2552 = vunpack.c.l.b16 %v2484
        %v2553 = vunpack.c.l.b16 %v2485
        %v2554 = vunpack.c.l.b16 %v2486
        %v2555 = vunpack.c.l.b16 %v2487
        %v2556 = vunpack.c.l.b16 %v2488
        %v2557 = vunpack.c.l.b16 %v2489
        %v2558 = vunpack.c.l.b16 %v2490
        %v2559 = vunpack.c.l.b16 %v2491
        %v2560 = vunpack.c.l.b16 %v2492
        %v2561 = vunpack.c.l.b16 %v2493
        %v2562 = vunpack.c.l.b16 %v2494
        %v2563 = vunpack.c.l.b16 %v2495
        %v2564 = vunpack.c.l.b16 %v2496
        %v2565 = vunpack.c.l.b16 %v2497
        %v2566 = vunpack.c.l.b16 %v2498
        %v2567 = vunpack.c.l.b16 %v2499
        %v2568 = vunpack.c.l.b16 %v2500
        %v2569 = vunpack.c.l.b16 %v2501
        %v2570 = vunpack.c.l.b16 %v2502
        %v2571 = vunpack.c.l.b16 %v2503
        %v2572 = vunpack.c.l.b16 %v2504
        %v2573 = vunpack.c.l.b16 %v2505
        %v2574 = vunpack.c.l.b16 %v2506
        %v2575 = vunpack.c.l.b16 %v2507
        %v2576 = vunpack.c.l.b16 %v2508
        %v2577 = vunpack.c.l.b16 %v2509
        %v2578 = vunpack.c.l.b16 %v2510
        %v2579 = vunpack.c.l.b16 %v2511
        %v2580 = vpack.c.b16 %v2549, %v2548
        %v2581 = vpack.c.b16 %v2551, %v2550
        %v2582 = vpack.c.b16 %v2553, %v2552
        %v2583 = vpack.c.b16 %v2555, %v2554
        %v2584 = vpack.c.b16 %v2557, %v2556
        %v2585 = vpack.c.b16 %v2559, %v2558
        %v2586 = vpack.c.b16 %v2561, %v2560
        %v2587 = vpack.c.b16 %v2563, %v2562
        %v2588 = vpack.c.b16 %v2565, %v2564
        %v2589 = vpack.c.b16 %v2567, %v2566
        %v2590 = vpack.c.b16 %v2569, %v2568
        %v2591 = vpack.c.b16 %v2571, %v2570
        %v2592 = vpack.c.b16 %v2573, %v2572
        %v2593 = vpack.c.b16 %v2575, %v2574
        %v2594 = vpack.c.b16 %v2577, %v2576
        %v2595 = vpack.c.b16 %v2579, %v2578
        %2612 = vmatpush.bf16.msra.mxu0 %v2587
        %2613 = vmatpush.bf16.msra.mxu0 %v2586
        %2614 = vmatpush.bf16.msra.mxu0 %v2585
        %2615 = vmatpush.bf16.msra.mxu0 %v2584
        %2616 = vmatpush.bf16.msra.mxu0 %v2583
        %2617 = vmatpush.bf16.msra.mxu0 %v2582
        %2618 = vmatpush.bf16.msra.mxu0 %v2581
        %2619 = vmatpush.bf16.msra.mxu0 %v2580
        %2620 = vmatmul.bf16.gmra.mxu0 %v2478
        %v2621 = vpop.f32.mrf.mxu0
        %v2622 = vadd.f32 %v2514, %v2621
        %v2623 = vpop.f32.mrf.mxu0
        %v2624 = vadd.f32 %v2514, %v2623
        %2625 = vdwg.mxu0
        %2626 = vmatpush.bf16.msra.mxu0 %v2595
        %2627 = vmatpush.bf16.msra.mxu0 %v2594
        %2628 = vmatpush.bf16.msra.mxu0 %v2593
        %2629 = vmatpush.bf16.msra.mxu0 %v2592
        %2630 = vmatpush.bf16.msra.mxu0 %v2591
        %2631 = vmatpush.bf16.msra.mxu0 %v2590
        %2632 = vmatpush.bf16.msra.mxu0 %v2589
        %2633 = vmatpush.bf16.msra.mxu0 %v2588
        %2634 = vmatmul.bf16.gmra.mxu0 %v2479
        %v2635 = vpop.f32.mrf.mxu0
        %v2636 = vadd.f32 %v2622, %v2635
        %v2637 = vpop.f32.mrf.mxu0
        %v2638 = vadd.f32 %v2624, %v2637
        %2639 = vdwg.mxu0
        %v2640 = vmax.f32 %v2636, 0.0
        %v2641 = vmax.f32 %v2638, 0.0
        %v2642 = vpack.c.bf16 %v2641, %v2640
        %v2643 = vld [vmem:[%s7] sm:$0xf]
        %v2644 = vld [vmem:[%s7 + $0x4] sm:$0xf]
        %v2645 = vld [vmem:[%s7 + $0x8] sm:$0xf]
        %v2646 = vld [vmem:[%s7 + $0xc] sm:$0xf]
        %v2647 = vld [vmem:[%s7 + $0x10] sm:$0xf]
        %v2648 = vld [vmem:[%s7 + $0x14] sm:$0xf]
        %v2649 = vld [vmem:[%s7 + $0x18] sm:$0xf]
        %v2650 = vld [vmem:[%s7 + $0x1c] sm:$0xf]
        %v2651 = vld [vmem:[%s7 + $0x20] sm:$0xf]
        %v2652 = vld [vmem:[%s7 + $0x24] sm:$0xf]
        %v2653 = vld [vmem:[%s7 + $0x28] sm:$0xf]
        %v2654 = vld [vmem:[%s7 + $0x2c] sm:$0xf]
        %v2655 = vld [vmem:[%s7 + $0x30] sm:$0xf]
        %v2656 = vld [vmem:[%s7 + $0x34] sm:$0xf]
        %v2657 = vld [vmem:[%s7 + $0x38] sm:$0xf]
        %v2658 = vld [vmem:[%s7 + $0x3c] sm:$0xf]
        %v2659 = vld [vmem:[%s8] sm:$0x1]
        %v2661 = vperm.slane %v2659, 0
        %v2679 = vunpack.c.l.b16 %v2643
        %v2680 = vunpack.c.l.b16 %v2644
        %v2681 = vunpack.c.l.b16 %v2645
        %v2682 = vunpack.c.l.b16 %v2646
        %v2683 = vunpack.c.l.b16 %v2647
        %v2684 = vunpack.c.l.b16 %v2648
        %v2685 = vunpack.c.l.b16 %v2649
        %v2686 = vunpack.c.l.b16 %v2650
        %v2687 = vunpack.c.l.b16 %v2651
        %v2688 = vunpack.c.l.b16 %v2652
        %v2689 = vunpack.c.l.b16 %v2653
        %v2690 = vunpack.c.l.b16 %v2654
        %v2691 = vunpack.c.l.b16 %v2655
        %v2692 = vunpack.c.l.b16 %v2656
        %v2693 = vunpack.c.l.b16 %v2657
        %v2694 = vunpack.c.l.b16 %v2658
        %v2695 = vpack.c.b16 %v2680, %v2679
        %v2696 = vpack.c.b16 %v2682, %v2681
        %v2697 = vpack.c.b16 %v2684, %v2683
        %v2698 = vpack.c.b16 %v2686, %v2685
        %v2699 = vpack.c.b16 %v2688, %v2687
        %v2700 = vpack.c.b16 %v2690, %v2689
        %v2701 = vpack.c.b16 %v2692, %v2691
        %v2702 = vpack.c.b16 %v2694, %v2693
        %2711 = vmatpush.bf16.msra.mxu0 %v2702
        %2712 = vmatpush.bf16.msra.mxu0 %v2701
        %2713 = vmatpush.bf16.msra.mxu0 %v2700
        %2714 = vmatpush.bf16.msra.mxu0 %v2699
        %2715 = vmatpush.bf16.msra.mxu0 %v2698
        %2716 = vmatpush.bf16.msra.mxu0 %v2697
        %2717 = vmatpush.bf16.msra.mxu0 %v2696
        %2718 = vmatpush.bf16.msra.mxu0 %v2695
        %2719 = vmatmul.bf16.gmra.mxu0 %v2642
        %v2720 = vpop.f32.mrf.mxu0
        %v2721 = vadd.f32 %v2661, %v2720
        %v2722 = vpop.f32.mrf.mxu0
        %v2723 = vadd.f32 %v2661, %v2722
        %2724 = vdwg.mxu0
        %v2725 = vpack.c.bf16 %v2721, %v2721
        %v2726 = vpack.c.bf16 %v2723, %v2723
        %2727 = vst [vmem:[%s354] sm:$0xf] %v2725
        %2728 = vst [vmem:[%s354 + $0x4] sm:$0xf] %v2726
        %s2729 = smul.u32 2, %s21
        %p2730 = scmp.lt.s32.totalorder %s2729, 3
        %s2731 = scalar_select %p2730, %s2729, 3
        %s2732 = smul.addr %s2731, 4
        %s2733 = scalar_lea.vmem %s9, %s2732
        // Predicated region
        $region61: #{digit_classifier_forward.1} parent=55 // pred_check
          %p2734 = pneg %p233
        $region62: #{digit_classifier_forward.1} parent=55 // pred_check_branch
          %2736 = sbr.rel (%p2734) target = $region64
        $region63: #{digit_classifier_forward.1} parent=55 // pred_region
          %s2737 = smul.u32 2, %s21
        $region64: #{digit_classifier_forward.1} parent=55 // pred_fallthru
          _
      $region56: #{digit_classifier_forward.1} parent=5 // pred_fallthru
        _
      %p2738 = scmp.le.s32.totalorder 2, %s16
      // Predicated region
      $region65: #{digit_classifier_forward.1} parent=5 // pred_check
        %p2739 = pneg %p2738
      $region66: #{digit_classifier_forward.1} parent=5 // pred_check_branch
        %2741 = sbr.rel (%p2739) target = $region68
      $region67: #{digit_classifier_forward.1} parent=5 // pred_region
        %s2742 = ssub.s32 %s16, 2
        // Predicated region
        $region69: #{digit_classifier_forward.1} parent=67 // pred_check
          %p2743 = pneg %p239
        $region70: #{digit_classifier_forward.1} parent=67 // pred_check_branch
          %2745 = sbr.rel (%p2743) target = $region72
        $region71: #{digit_classifier_forward.1} parent=67 // pred_region
          %s2746 = smul.u32 2, %s22
          %p2747 = scmp.lt.s32.totalorder %s2746, 3
          %s2748 = scalar_select %p2747, %s2746, 3
          %s2749 = smul.addr %s2748, 4
          %s2750 = scalar_lea.vmem %s9, %s2749
        $region72: #{digit_classifier_forward.1} parent=67 // pred_fallthru
          _
      $region68: #{digit_classifier_forward.1} parent=5 // pred_fallthru
        _
    $region6: #{digit_classifier_forward.1} parent=1 // loop_footer
      %s20 = sadd.s32 1, %s16
    $region7: #{digit_classifier_forward.1} parent=1 // loop_footer_branch
      %15 = sbr.rel target = $region3
    $region8: #{digit_classifier_forward.1} parent=1 // loop_exit
      _
    %2751 = vsyncpa [#allocation3], 1
    %s2752 = scalar_lea.sflag [#allocation3], 1
    %2753 = vsyncpa %s2752, 1

</llo_original>
